<compile_context>
chip_gen: v5e
topology: v5e:2x2
jax: 0.10.0
libtpu: 0.0.40
codegen_flags: <defaults>
</compile_context>

<pallas_src>
import math

import jax
import jax.numpy as jnp
from jax.experimental import pallas as pl
from jax.experimental.pallas import tpu as pltpu


# ------------------------------------------------------------------ helpers

def _ln(x, w, b, eps=1e-5):
    """LayerNorm over last dim (matches torch.nn.LayerNorm defaults)."""
    mu = jnp.mean(x, axis=-1, keepdims=True)
    var = jnp.mean((x - mu) ** 2, axis=-1, keepdims=True)
    return (x - mu) * jax.lax.rsqrt(var + eps) * w + b


# ------------------------------------------------------------------ kernel

def make_fused_kernel(T, B, H, head_dim, attn_mask):
    """One grid step == one MulT TransformerEncoderLayer (pre-norm SA + FFN),
    plus a final-LayerNorm epilogue on the last step."""
    D = H * head_dim

    def kernel(x_ref, ln1w_ref, ln1b_ref,
               wq_ref, bq_ref, wk_ref, bk_ref, wv_ref, bv_ref,
               wo_ref, bo_ref,
               ln2w_ref, ln2b_ref,
               w1_ref, b1_ref, w2_ref, b2_ref,
               lnfw_ref, lnfb_ref,
               o_ref, xs_ref):
        layer = pl.program_id(0)

        # Load the input slab into the resident VMEM accumulator once.
        @pl.when(layer == 0)
        def _():
            xs_ref[...] = x_ref[...]

        x = xs_ref[...]                                            # (B*T, D) f32

        # ---------------- self-attention block (pre-norm) ----------------
        xn = _ln(x, ln1w_ref[...], ln1b_ref[...])
        xn_b = xn.astype(jnp.bfloat16)
        # wq/bq already carry the 1/sqrt(head_dim) scaling (folded at prep).
        q = jnp.dot(xn_b, wq_ref[...], preferred_element_type=jnp.float32) + bq_ref[...]
        k = jnp.dot(xn_b, wk_ref[...], preferred_element_type=jnp.float32) + bk_ref[...]
        v = jnp.dot(xn_b, wv_ref[...], preferred_element_type=jnp.float32) + bv_ref[...]

        q3 = q.reshape(B, T, D)                   # tile-aligned sublane split
        k3 = k.reshape(B, T, D)
        v3 = v.reshape(B, T, D)

        if attn_mask:                              # hoisted: built once, reused
            row = jax.lax.broadcasted_iota(jnp.int32, (T, T), 0)
            col = jax.lax.broadcasted_iota(jnp.int32, (T, T), 1)
            future = (col > row)[None, :, :]       # (1, T, T)

        head_outs = []
        for h in range(H):                         # H static & small
            sl = slice(h * head_dim, (h + 1) * head_dim)
            qh = q3[:, :, sl].astype(jnp.bfloat16)
            kh = k3[:, :, sl].astype(jnp.bfloat16)
            vh = v3[:, :, sl].astype(jnp.bfloat16)
            s = jnp.einsum('bqd,bkd->bqk', qh, kh,
                           preferred_element_type=jnp.float32)     # (B, T, T) f32
            if attn_mask:
                s = jnp.where(future, -1e30, s)
            s = s - jnp.max(s, axis=-1, keepdims=True)             # f32 softmax
            e = jnp.exp(s)
            p = e * pl.reciprocal(jnp.sum(e, axis=-1, keepdims=True), approx=True)
            head_outs.append(
                jnp.einsum('bqk,bkd->bqd', p.astype(jnp.bfloat16), vh,
                           preferred_element_type=jnp.float32))    # (B, T, hd)
        attn = jnp.concatenate(head_outs, axis=-1).reshape(B * T, D)
        attn = jnp.dot(attn.astype(jnp.bfloat16), wo_ref[...],
                       preferred_element_type=jnp.float32) + bo_ref[...]
        x = x + attn                               # residual (res_dropout = id)

        # ---------------- feed-forward block (pre-norm) ----------------
        xn = _ln(x, ln2w_ref[...], ln2b_ref[...])
        h1 = jnp.dot(xn.astype(jnp.bfloat16), w1_ref[...],
                     preferred_element_type=jnp.float32) + b1_ref[...]
        h1 = jnp.maximum(h1, 0.0)                  # ReLU (relu_dropout = id)
        y = jnp.dot(h1.astype(jnp.bfloat16), w2_ref[...],
                    preferred_element_type=jnp.float32) + b2_ref[...]
        x = x + y
        xs_ref[...] = x                            # carry to next layer step

        # ---------------- final LayerNorm epilogue ----------------
        @pl.when(layer == pl.num_programs(0) - 1)
        def _():
            o_ref[...] = _ln(x, lnfw_ref[...], lnfb_ref[...])

    return kernel


# ------------------------------------------------------------------ wrapper

def fused_encoder(x2d, fp, *, T, B, H, head_dim, attn_mask):
    N, D = x2d.shape
    Fh = fp["w1_t"].shape[-1]
    L = fp["wq_t"].shape[0]

    def const2d(r, c):
        return pl.BlockSpec((r, c), lambda l: (0, 0))

    def stacked(*tail):                            # leading layer axis, squeezed
        return pl.BlockSpec((None,) + tail, lambda l: (l,) + (0,) * len(tail))

    in_specs = [
        const2d(N, D),                             # x2d (loaded once)
        stacked(1, D), stacked(1, D),              # ln1 w/b
        stacked(D, D), stacked(1, D),              # wq, bq
        stacked(D, D), stacked(1, D),              # wk, bk
        stacked(D, D), stacked(1, D),              # wv, bv
        stacked(D, D), stacked(1, D),              # wo, bo
        stacked(1, D), stacked(1, D),              # ln2 w/b
        stacked(D, Fh), stacked(1, Fh),            # w1, b1
        stacked(Fh, D), stacked(1, D),             # w2, b2
        const2d(1, D), const2d(1, D),              # final LN w/b
    ]

    kernel = make_fused_kernel(T, B, H, head_dim, attn_mask)

    return pl.pallas_call(
        kernel,
        out_shape=jax.ShapeDtypeStruct((N, D), jnp.float32),
        grid_spec=pltpu.PrefetchScalarGridSpec(
            num_scalar_prefetch=0,
            grid=(L,),
            in_specs=in_specs,
            out_specs=const2d(N, D),
            scratch_shapes=[pltpu.VMEM((N, D), jnp.float32)],
        ),
        # Layer axis carries the resident activation -> must be "arbitrary".
        # TODO(synk): on v7x add a size-gated "parallel" row-block axis so the
        # second TensorCore gets work once B*T*D is compute-bound.
        compiler_params=pltpu.CompilerParams(
            dimension_semantics=("arbitrary",)),
    )(x2d,
      fp["ln1_w"], fp["ln1_b"],
      fp["wq_t"], fp["bq"], fp["wk_t"], fp["bk"], fp["wv_t"], fp["bv"],
      fp["wo_t"], fp["bo"],
      fp["ln2_w"], fp["ln2_b"],
      fp["w1_t"], fp["b1"], fp["w2_t"], fp["b2"],
      fp["ln_w"], fp["ln_b"])


def sinusoidal_positions(T, D):
    # fairseq-style SinusoidalPositionalEmbedding (padding_idx=0).  Inputs have
    # no padding, so positions are 1..T.
    half = D // 2
    freq = jnp.exp(jnp.arange(half, dtype=jnp.float32)
                   * -(math.log(10000.0) / (half - 1)))
    pos = jnp.arange(1, T + 1, dtype=jnp.float32)[:, None]          # (T, 1)
    ang = pos * freq[None, :]
    emb = jnp.concatenate([jnp.sin(ang), jnp.cos(ang)], axis=1)      # (T, D)
    if D % 2 == 1:
        emb = jnp.concatenate([emb, jnp.zeros((T, 1), jnp.float32)], axis=1)
    return emb


def init_params(key, D, layers):
    """Deterministic synthetic parameters (shapes follow the PyTorch module)."""
    ffn = 4 * D

    def nrm(k, shape, scale=0.05):
        return scale * jax.random.normal(k, shape, dtype=jnp.float32)

    params = {"layers": [],
              "ln_w": jnp.ones((1, D), jnp.float32),
              "ln_b": jnp.zeros((1, D), jnp.float32)}
    for _ in range(layers):
        key, k1, k2, k3, k4, k5, k6 = jax.random.split(key, 7)
        # weights stored transposed (in_dim, out_dim): x @ W_t == torch x @ W.T
        params["layers"].append({
            "ln1_w": jnp.ones((1, D), jnp.float32),
            "ln1_b": jnp.zeros((1, D), jnp.float32),
            "wq_t": nrm(k1, (D, D)), "bq": jnp.zeros((1, D), jnp.float32),
            "wk_t": nrm(k2, (D, D)), "bk": jnp.zeros((1, D), jnp.float32),
            "wv_t": nrm(k3, (D, D)), "bv": jnp.zeros((1, D), jnp.float32),
            "wo_t": nrm(k4, (D, D)), "bo": jnp.zeros((1, D), jnp.float32),
            "ln2_w": jnp.ones((1, D), jnp.float32),
            "ln2_b": jnp.zeros((1, D), jnp.float32),
            "w1_t": nrm(k5, (D, ffn)), "b1": jnp.zeros((1, ffn), jnp.float32),
            "w2_t": nrm(k6, (ffn, D)), "b2": jnp.zeros((1, D), jnp.float32),
        })
    return params


def prepare_fused_params(params, H):
    """One-time param transform: stack every per-layer tensor along a leading
    layer axis, fold the 1/sqrt(head_dim) query scaling into wq/bq and cast
    matmul weights to bf16 (MXU-native); LN params / biases stay f32."""
    D = params["layers"][0]["wq_t"].shape[0]
    scaling = (D // H) ** -0.5
    bf16 = jnp.bfloat16

    def stack(name, scale=1.0, dtype=None):
        arr = jnp.stack([lp[name] for lp in params["layers"]], axis=0)
        if scale != 1.0:
            arr = arr * scale
        return arr.astype(dtype) if dtype is not None else arr

    return {
        "ln1_w": stack("ln1_w"), "ln1_b": stack("ln1_b"),
        "wq_t": stack("wq_t", scaling, bf16), "bq": stack("bq", scaling),
        "wk_t": stack("wk_t", dtype=bf16),    "bk": stack("bk"),
        "wv_t": stack("wv_t", dtype=bf16),    "bv": stack("bv"),
        "wo_t": stack("wo_t", dtype=bf16),    "bo": stack("bo"),
        "ln2_w": stack("ln2_w"), "ln2_b": stack("ln2_b"),
        "w1_t": stack("w1_t", dtype=bf16),    "b1": stack("b1"),
        "w2_t": stack("w2_t", dtype=bf16),    "b2": stack("b2"),
        "ln_w": params["ln_w"], "ln_b": params["ln_b"],
    }


def transformer_fusion_forward(fused, text_x, audio_x, video_x, *, H,
                               attn_mask=False):
    """Mirrors transformer_fusion.forward (eval mode)."""
    # permute(2,0,1) then concat along dim=2 == concat features, (B,D,T)->(T,B,D)
    x = jnp.concatenate([text_x, audio_x, video_x], axis=1)         # (B, D, T)
    x = jnp.transpose(x, (2, 0, 1))                                 # (T, B, D)
    T, B, D = x.shape
    head_dim = D // H

    # TransformerEncoder prologue (glue): embed scale + sinusoidal positions.
    x = math.sqrt(D) * x + sinusoidal_positions(T, D)[:, None, :]

    # batch-major 2-D slab: row = b*T + t, feature axis on TPU lanes.
    x2d = jnp.transpose(x, (1, 0, 2)).reshape(B * T, D)

    out2d = fused_encoder(x2d, fused, T=T, B=B, H=H, head_dim=head_dim,
                          attn_mask=attn_mask)

    # trans_seq[0] : first time step, shape (B, D)
    return out2d.reshape(B, T, D)[:, 0, :]


# ------------------------------------------------------------------ main

if __name__ == "__main__":
    # synthetic args: fus_d_l=32, fus_d_a=16, fus_d_v=16, fus_nheads=4,
    # fus_layers=2, all dropouts=0 (eval), fus_attn_mask=False
    B, T = 2, 8
    d_l, d_a, d_v = 32, 16, 16
    D = d_l + d_a + d_v
    H, n_layers = 4, 2

    key = jax.random.PRNGKey(0)
    k1, k2, k3, kp = jax.random.split(key, 4)
    text_x = jax.random.normal(k1, (B, d_l, T), dtype=jnp.float32)
    audio_x = jax.random.normal(k2, (B, d_a, T), dtype=jnp.float32)
    video_x = jax.random.normal(k3, (B, d_v, T), dtype=jnp.float32)

    params = init_params(kp, D, n_layers)
    fused = prepare_fused_params(params, H)         # one-time stack/fold/cast

    out = transformer_fusion_forward(fused, text_x, audio_x, video_x,
                                     H=H, attn_mask=False)
    out = jax.block_until_ready(out)
    assert out.shape == (B, D) and jnp.all(jnp.isfinite(out))
    print("KERNEL_OK")
</pallas_src>

<mosaic_0001>
module attributes {stable_mosaic.version = 11 : i64} {
  func.func @kernel(%arg0: i32, %arg1: memref<16x64xf32, #tpu.memory_space<vmem>>, %arg2: memref<1x1x64xf32, #tpu.memory_space<vmem>>, %arg3: memref<1x1x64xf32, #tpu.memory_space<vmem>>, %arg4: memref<1x64x64xbf16, #tpu.memory_space<vmem>>, %arg5: memref<1x1x64xf32, #tpu.memory_space<vmem>>, %arg6: memref<1x64x64xbf16, #tpu.memory_space<vmem>>, %arg7: memref<1x1x64xf32, #tpu.memory_space<vmem>>, %arg8: memref<1x64x64xbf16, #tpu.memory_space<vmem>>, %arg9: memref<1x1x64xf32, #tpu.memory_space<vmem>>, %arg10: memref<1x64x64xbf16, #tpu.memory_space<vmem>>, %arg11: memref<1x1x64xf32, #tpu.memory_space<vmem>>, %arg12: memref<1x1x64xf32, #tpu.memory_space<vmem>>, %arg13: memref<1x1x64xf32, #tpu.memory_space<vmem>>, %arg14: memref<1x64x256xbf16, #tpu.memory_space<vmem>>, %arg15: memref<1x1x256xf32, #tpu.memory_space<vmem>>, %arg16: memref<1x256x64xbf16, #tpu.memory_space<vmem>>, %arg17: memref<1x1x64xf32, #tpu.memory_space<vmem>>, %arg18: memref<1x64xf32, #tpu.memory_space<vmem>>, %arg19: memref<1x64xf32, #tpu.memory_space<vmem>>, %arg20: memref<16x64xf32, #tpu.memory_space<vmem>>, %arg21: memref<16x64xf32, #tpu.memory_space<vmem>>) attributes {dimension_semantics = [#tpu.dimension_semantics<arbitrary>], iteration_bounds = array<i64: 2>, scalar_prefetch = 0 : i64, scratch_operands = 1 : i64, tpu.core_type = #tpu.core_type<tc>, window_params = [{pipeline_mode = #tpu.pipeline_mode<synchronous>, transform_indices = @transform_0, window_bounds = array<i64: 16, 64>}, {transform_indices = @transform_1, window_bounds = array<i64: 1, 1, 64>}, {transform_indices = @transform_2, window_bounds = array<i64: 1, 1, 64>}, {transform_indices = @transform_3, window_bounds = array<i64: 1, 64, 64>}, {transform_indices = @transform_4, window_bounds = array<i64: 1, 1, 64>}, {transform_indices = @transform_5, window_bounds = array<i64: 1, 64, 64>}, {transform_indices = @transform_6, window_bounds = array<i64: 1, 1, 64>}, {transform_indices = @transform_7, window_bounds = array<i64: 1, 64, 64>}, {transform_indices = @transform_8, window_bounds = array<i64: 1, 1, 64>}, {transform_indices = @transform_9, window_bounds = array<i64: 1, 64, 64>}, {transform_indices = @transform_10, window_bounds = array<i64: 1, 1, 64>}, {transform_indices = @transform_11, window_bounds = array<i64: 1, 1, 64>}, {transform_indices = @transform_12, window_bounds = array<i64: 1, 1, 64>}, {transform_indices = @transform_13, window_bounds = array<i64: 1, 64, 256>}, {transform_indices = @transform_14, window_bounds = array<i64: 1, 1, 256>}, {transform_indices = @transform_15, window_bounds = array<i64: 1, 256, 64>}, {transform_indices = @transform_16, window_bounds = array<i64: 1, 1, 64>}, {pipeline_mode = #tpu.pipeline_mode<synchronous>, transform_indices = @transform_17, window_bounds = array<i64: 1, 64>}, {pipeline_mode = #tpu.pipeline_mode<synchronous>, transform_indices = @transform_18, window_bounds = array<i64: 1, 64>}, {pipeline_mode = #tpu.pipeline_mode<synchronous>, transform_indices = @transform_19, window_bounds = array<i64: 16, 64>}]} {
    %c0_i32 = arith.constant 0 : i32
    %0 = arith.cmpi eq, %arg0, %c0_i32 : i32
    %1 = arith.extui %0 : i1 to i32
    %c0_i32_0 = arith.constant 0 : i32
    %2 = arith.cmpi ne, %1, %c0_i32_0 : i32
    scf.if %2 {
      %c0_85 = arith.constant 0 : index
      %c0_86 = arith.constant 0 : index
      %191 = vector.load %arg1[%c0_85, %c0_86] : memref<16x64xf32, #tpu.memory_space<vmem>>, vector<16x64xf32>
      %c0_87 = arith.constant 0 : index
      %c0_88 = arith.constant 0 : index
      %192 = vector.load %arg21[%c0_87, %c0_88] : memref<16x64xf32, #tpu.memory_space<vmem>>, vector<16x64xf32>
      tpu.vector_store %arg21[%c0_87, %c0_88], %191 {strides = array<i32>} : memref<16x64xf32, #tpu.memory_space<vmem>>, vector<16x64xf32>,
    } else {
    }
    %c0 = arith.constant 0 : index
    %c0_1 = arith.constant 0 : index
    %3 = vector.load %arg21[%c0, %c0_1] : memref<16x64xf32, #tpu.memory_space<vmem>>, vector<16x64xf32>
    %c0_2 = arith.constant 0 : index
    %c0_3 = arith.constant 0 : index
    %c0_4 = arith.constant 0 : index
    %4 = vector.load %arg2[%c0_2, %c0_3, %c0_4] : memref<1x1x64xf32, #tpu.memory_space<vmem>>, vector<1x1x64xf32>
    %5 = vector.shape_cast %4 : vector<1x1x64xf32> to vector<1x64xf32>
    %c0_5 = arith.constant 0 : index
    %c0_6 = arith.constant 0 : index
    %c0_7 = arith.constant 0 : index
    %6 = vector.load %arg3[%c0_5, %c0_6, %c0_7] : memref<1x1x64xf32, #tpu.memory_space<vmem>>, vector<1x1x64xf32>
    %7 = vector.shape_cast %6 : vector<1x1x64xf32> to vector<1x64xf32>
    %cst = arith.constant dense<0.000000e+00> : vector<16xf32>
    %8 = vector.multi_reduction <add>, %3, %cst [1] : vector<16x64xf32> to vector<16xf32>
    %9 = vector.shape_cast %8 : vector<16xf32> to vector<16x1xf32>
    %cst_8 = arith.constant 6.400000e+01 : f32
    %10 = vector.broadcast %cst_8 : f32 to vector<16x1xf32>
    %11 = arith.divf %9, %10 : vector<16x1xf32>
    %12 = vector.broadcast %11 : vector<16x1xf32> to vector<16x64xf32>
    %13 = arith.subf %3, %12 : vector<16x64xf32>
    %14 = arith.mulf %13, %13 : vector<16x64xf32>
    %cst_9 = arith.constant dense<0.000000e+00> : vector<16xf32>
    %15 = vector.multi_reduction <add>, %14, %cst_9 [1] : vector<16x64xf32> to vector<16xf32>
    %16 = vector.shape_cast %15 : vector<16xf32> to vector<16x1xf32>
    %cst_10 = arith.constant 6.400000e+01 : f32
    %17 = vector.broadcast %cst_10 : f32 to vector<16x1xf32>
    %18 = arith.divf %16, %17 : vector<16x1xf32>
    %19 = vector.broadcast %11 : vector<16x1xf32> to vector<16x64xf32>
    %20 = arith.subf %3, %19 : vector<16x64xf32>
    %cst_11 = arith.constant 9.99999974E-6 : f32
    %21 = vector.broadcast %cst_11 : f32 to vector<16x1xf32>
    %22 = arith.addf %18, %21 : vector<16x1xf32>
    %23 = math.rsqrt %22 : vector<16x1xf32>
    %24 = vector.broadcast %23 : vector<16x1xf32> to vector<16x64xf32>
    %25 = arith.mulf %20, %24 : vector<16x64xf32>
    %26 = vector.broadcast %5 : vector<1x64xf32> to vector<16x64xf32>
    %27 = arith.mulf %25, %26 : vector<16x64xf32>
    %28 = vector.broadcast %7 : vector<1x64xf32> to vector<16x64xf32>
    %29 = arith.addf %27, %28 : vector<16x64xf32>
    %30 = arith.truncf %29 : vector<16x64xf32> to vector<16x64xbf16>
    %c0_12 = arith.constant 0 : index
    %c0_13 = arith.constant 0 : index
    %c0_14 = arith.constant 0 : index
    %31 = vector.load %arg4[%c0_12, %c0_13, %c0_14] : memref<1x64x64xbf16, #tpu.memory_space<vmem>>, vector<1x64x64xbf16>
    %32 = vector.shape_cast %31 : vector<1x64x64xbf16> to vector<64x64xbf16>
    %cst_15 = arith.constant dense<0.000000e+00> : vector<16x64xf32>
    %33 = tpu.matmul %30, %32, %cst_15 {dimension_numbers = #tpu.dot_dimension_numbers<[1], [0], [0], [1], [0, 0, 1, 1], [], []>} : vector<16x64xbf16>, vector<64x64xbf16>, vector<16x64xf32> -> vector<16x64xf32>
    %c0_16 = arith.constant 0 : index
    %c0_17 = arith.constant 0 : index
    %c0_18 = arith.constant 0 : index
    %34 = vector.load %arg5[%c0_16, %c0_17, %c0_18] : memref<1x1x64xf32, #tpu.memory_space<vmem>>, vector<1x1x64xf32>
    %35 = vector.shape_cast %34 : vector<1x1x64xf32> to vector<1x64xf32>
    %36 = vector.broadcast %35 : vector<1x64xf32> to vector<16x64xf32>
    %37 = arith.addf %33, %36 : vector<16x64xf32>
    %c0_19 = arith.constant 0 : index
    %c0_20 = arith.constant 0 : index
    %c0_21 = arith.constant 0 : index
    %38 = vector.load %arg6[%c0_19, %c0_20, %c0_21] : memref<1x64x64xbf16, #tpu.memory_space<vmem>>, vector<1x64x64xbf16>
    %39 = vector.shape_cast %38 : vector<1x64x64xbf16> to vector<64x64xbf16>
    %cst_22 = arith.constant dense<0.000000e+00> : vector<16x64xf32>
    %40 = tpu.matmul %30, %39, %cst_22 {dimension_numbers = #tpu.dot_dimension_numbers<[1], [0], [0], [1], [0, 0, 1, 1], [], []>} : vector<16x64xbf16>, vector<64x64xbf16>, vector<16x64xf32> -> vector<16x64xf32>
    %c0_23 = arith.constant 0 : index
    %c0_24 = arith.constant 0 : index
    %c0_25 = arith.constant 0 : index
    %41 = vector.load %arg7[%c0_23, %c0_24, %c0_25] : memref<1x1x64xf32, #tpu.memory_space<vmem>>, vector<1x1x64xf32>
    %42 = vector.shape_cast %41 : vector<1x1x64xf32> to vector<1x64xf32>
    %43 = vector.broadcast %42 : vector<1x64xf32> to vector<16x64xf32>
    %44 = arith.addf %40, %43 : vector<16x64xf32>
    %c0_26 = arith.constant 0 : index
    %c0_27 = arith.constant 0 : index
    %c0_28 = arith.constant 0 : index
    %45 = vector.load %arg8[%c0_26, %c0_27, %c0_28] : memref<1x64x64xbf16, #tpu.memory_space<vmem>>, vector<1x64x64xbf16>
    %46 = vector.shape_cast %45 : vector<1x64x64xbf16> to vector<64x64xbf16>
    %cst_29 = arith.constant dense<0.000000e+00> : vector<16x64xf32>
    %47 = tpu.matmul %30, %46, %cst_29 {dimension_numbers = #tpu.dot_dimension_numbers<[1], [0], [0], [1], [0, 0, 1, 1], [], []>} : vector<16x64xbf16>, vector<64x64xbf16>, vector<16x64xf32> -> vector<16x64xf32>
    %c0_30 = arith.constant 0 : index
    %c0_31 = arith.constant 0 : index
    %c0_32 = arith.constant 0 : index
    %48 = vector.load %arg9[%c0_30, %c0_31, %c0_32] : memref<1x1x64xf32, #tpu.memory_space<vmem>>, vector<1x1x64xf32>
    %49 = vector.shape_cast %48 : vector<1x1x64xf32> to vector<1x64xf32>
    %50 = vector.broadcast %49 : vector<1x64xf32> to vector<16x64xf32>
    %51 = arith.addf %47, %50 : vector<16x64xf32>
    %52 = vector.shape_cast %37 : vector<16x64xf32> to vector<2x8x64xf32>
    %53 = vector.shape_cast %44 : vector<16x64xf32> to vector<2x8x64xf32>
    %54 = vector.shape_cast %51 : vector<16x64xf32> to vector<2x8x64xf32>
    %55 = vector.extract_strided_slice %52 {offsets = [0, 0, 0], sizes = [2, 8, 16], strides = [1, 1, 1]} : vector<2x8x64xf32> to vector<2x8x16xf32>
    %56 = arith.truncf %55 : vector<2x8x16xf32> to vector<2x8x16xbf16>
    %57 = vector.extract_strided_slice %53 {offsets = [0, 0, 0], sizes = [2, 8, 16], strides = [1, 1, 1]} : vector<2x8x64xf32> to vector<2x8x16xf32>
    %58 = arith.truncf %57 : vector<2x8x16xf32> to vector<2x8x16xbf16>
    %59 = vector.extract_strided_slice %54 {offsets = [0, 0, 0], sizes = [2, 8, 16], strides = [1, 1, 1]} : vector<2x8x64xf32> to vector<2x8x16xf32>
    %60 = arith.truncf %59 : vector<2x8x16xf32> to vector<2x8x16xbf16>
    "tpu.trace_start"() <{level = 10 : i32, message = "bqd,bkd->bqk"}> : () -> ()
    %cst_33 = arith.constant dense<0.000000e+00> : vector<2x8x8xf32>
    %61 = tpu.matmul %56, %58, %cst_33 {dimension_numbers = #tpu.dot_dimension_numbers<[2], [2], [1], [1], [0, 0, 0, 1, 1, 1], [0], [0]>} : vector<2x8x16xbf16>, vector<2x8x16xbf16>, vector<2x8x8xf32> -> vector<2x8x8xf32>
    "tpu.trace_stop"() : () -> ()
    %cst_34 = arith.constant dense<0xFF800000> : vector<2x8xf32>
    %62 = vector.multi_reduction <maximumf>, %61, %cst_34 [2] : vector<2x8x8xf32> to vector<2x8xf32>
    %63 = vector.shape_cast %62 : vector<2x8xf32> to vector<2x8x1xf32>
    %64 = vector.broadcast %63 : vector<2x8x1xf32> to vector<2x8x8xf32>
    %65 = arith.subf %61, %64 : vector<2x8x8xf32>
    %66 = math.exp %65 : vector<2x8x8xf32>
    %cst_35 = arith.constant dense<0.000000e+00> : vector<2x8xf32>
    %67 = vector.multi_reduction <add>, %66, %cst_35 [2] : vector<2x8x8xf32> to vector<2x8xf32>
    %68 = vector.shape_cast %67 : vector<2x8xf32> to vector<2x8x1xf32>
    %69 = tpu.reciprocal %68 {approx = true} : vector<2x8x1xf32> -> vector<2x8x1xf32>
    %70 = vector.broadcast %69 : vector<2x8x1xf32> to vector<2x8x8xf32>
    %71 = arith.mulf %66, %70 : vector<2x8x8xf32>
    %72 = arith.truncf %71 : vector<2x8x8xf32> to vector<2x8x8xbf16>
    "tpu.trace_start"() <{level = 10 : i32, message = "bqk,bkd->bqd"}> : () -> ()
    %cst_36 = arith.constant dense<0.000000e+00> : vector<2x8x16xf32>
    %73 = tpu.matmul %72, %60, %cst_36 {dimension_numbers = #tpu.dot_dimension_numbers<[2], [1], [1], [2], [0, 0, 0, 1, 1, 2], [0], [0]>} : vector<2x8x8xbf16>, vector<2x8x16xbf16>, vector<2x8x16xf32> -> vector<2x8x16xf32>
    "tpu.trace_stop"() : () -> ()
    %74 = vector.extract_strided_slice %52 {offsets = [0, 0, 16], sizes = [2, 8, 16], strides = [1, 1, 1]} : vector<2x8x64xf32> to vector<2x8x16xf32>
    %75 = arith.truncf %74 : vector<2x8x16xf32> to vector<2x8x16xbf16>
    %76 = vector.extract_strided_slice %53 {offsets = [0, 0, 16], sizes = [2, 8, 16], strides = [1, 1, 1]} : vector<2x8x64xf32> to vector<2x8x16xf32>
    %77 = arith.truncf %76 : vector<2x8x16xf32> to vector<2x8x16xbf16>
    %78 = vector.extract_strided_slice %54 {offsets = [0, 0, 16], sizes = [2, 8, 16], strides = [1, 1, 1]} : vector<2x8x64xf32> to vector<2x8x16xf32>
    %79 = arith.truncf %78 : vector<2x8x16xf32> to vector<2x8x16xbf16>
    "tpu.trace_start"() <{level = 10 : i32, message = "bqd,bkd->bqk"}> : () -> ()
    %cst_37 = arith.constant dense<0.000000e+00> : vector<2x8x8xf32>
    %80 = tpu.matmul %75, %77, %cst_37 {dimension_numbers = #tpu.dot_dimension_numbers<[2], [2], [1], [1], [0, 0, 0, 1, 1, 1], [0], [0]>} : vector<2x8x16xbf16>, vector<2x8x16xbf16>, vector<2x8x8xf32> -> vector<2x8x8xf32>
    "tpu.trace_stop"() : () -> ()
    %cst_38 = arith.constant dense<0xFF800000> : vector<2x8xf32>
    %81 = vector.multi_reduction <maximumf>, %80, %cst_38 [2] : vector<2x8x8xf32> to vector<2x8xf32>
    %82 = vector.shape_cast %81 : vector<2x8xf32> to vector<2x8x1xf32>
    %83 = vector.broadcast %82 : vector<2x8x1xf32> to vector<2x8x8xf32>
    %84 = arith.subf %80, %83 : vector<2x8x8xf32>
    %85 = math.exp %84 : vector<2x8x8xf32>
    %cst_39 = arith.constant dense<0.000000e+00> : vector<2x8xf32>
    %86 = vector.multi_reduction <add>, %85, %cst_39 [2] : vector<2x8x8xf32> to vector<2x8xf32>
    %87 = vector.shape_cast %86 : vector<2x8xf32> to vector<2x8x1xf32>
    %88 = tpu.reciprocal %87 {approx = true} : vector<2x8x1xf32> -> vector<2x8x1xf32>
    %89 = vector.broadcast %88 : vector<2x8x1xf32> to vector<2x8x8xf32>
    %90 = arith.mulf %85, %89 : vector<2x8x8xf32>
    %91 = arith.truncf %90 : vector<2x8x8xf32> to vector<2x8x8xbf16>
    "tpu.trace_start"() <{level = 10 : i32, message = "bqk,bkd->bqd"}> : () -> ()
    %cst_40 = arith.constant dense<0.000000e+00> : vector<2x8x16xf32>
    %92 = tpu.matmul %91, %79, %cst_40 {dimension_numbers = #tpu.dot_dimension_numbers<[2], [1], [1], [2], [0, 0, 0, 1, 1, 2], [0], [0]>} : vector<2x8x8xbf16>, vector<2x8x16xbf16>, vector<2x8x16xf32> -> vector<2x8x16xf32>
    "tpu.trace_stop"() : () -> ()
    %93 = vector.extract_strided_slice %52 {offsets = [0, 0, 32], sizes = [2, 8, 16], strides = [1, 1, 1]} : vector<2x8x64xf32> to vector<2x8x16xf32>
    %94 = arith.truncf %93 : vector<2x8x16xf32> to vector<2x8x16xbf16>
    %95 = vector.extract_strided_slice %53 {offsets = [0, 0, 32], sizes = [2, 8, 16], strides = [1, 1, 1]} : vector<2x8x64xf32> to vector<2x8x16xf32>
    %96 = arith.truncf %95 : vector<2x8x16xf32> to vector<2x8x16xbf16>
    %97 = vector.extract_strided_slice %54 {offsets = [0, 0, 32], sizes = [2, 8, 16], strides = [1, 1, 1]} : vector<2x8x64xf32> to vector<2x8x16xf32>
    %98 = arith.truncf %97 : vector<2x8x16xf32> to vector<2x8x16xbf16>
    "tpu.trace_start"() <{level = 10 : i32, message = "bqd,bkd->bqk"}> : () -> ()
    %cst_41 = arith.constant dense<0.000000e+00> : vector<2x8x8xf32>
    %99 = tpu.matmul %94, %96, %cst_41 {dimension_numbers = #tpu.dot_dimension_numbers<[2], [2], [1], [1], [0, 0, 0, 1, 1, 1], [0], [0]>} : vector<2x8x16xbf16>, vector<2x8x16xbf16>, vector<2x8x8xf32> -> vector<2x8x8xf32>
    "tpu.trace_stop"() : () -> ()
    %cst_42 = arith.constant dense<0xFF800000> : vector<2x8xf32>
    %100 = vector.multi_reduction <maximumf>, %99, %cst_42 [2] : vector<2x8x8xf32> to vector<2x8xf32>
    %101 = vector.shape_cast %100 : vector<2x8xf32> to vector<2x8x1xf32>
    %102 = vector.broadcast %101 : vector<2x8x1xf32> to vector<2x8x8xf32>
    %103 = arith.subf %99, %102 : vector<2x8x8xf32>
    %104 = math.exp %103 : vector<2x8x8xf32>
    %cst_43 = arith.constant dense<0.000000e+00> : vector<2x8xf32>
    %105 = vector.multi_reduction <add>, %104, %cst_43 [2] : vector<2x8x8xf32> to vector<2x8xf32>
    %106 = vector.shape_cast %105 : vector<2x8xf32> to vector<2x8x1xf32>
    %107 = tpu.reciprocal %106 {approx = true} : vector<2x8x1xf32> -> vector<2x8x1xf32>
    %108 = vector.broadcast %107 : vector<2x8x1xf32> to vector<2x8x8xf32>
    %109 = arith.mulf %104, %108 : vector<2x8x8xf32>
    %110 = arith.truncf %109 : vector<2x8x8xf32> to vector<2x8x8xbf16>
    "tpu.trace_start"() <{level = 10 : i32, message = "bqk,bkd->bqd"}> : () -> ()
    %cst_44 = arith.constant dense<0.000000e+00> : vector<2x8x16xf32>
    %111 = tpu.matmul %110, %98, %cst_44 {dimension_numbers = #tpu.dot_dimension_numbers<[2], [1], [1], [2], [0, 0, 0, 1, 1, 2], [0], [0]>} : vector<2x8x8xbf16>, vector<2x8x16xbf16>, vector<2x8x16xf32> -> vector<2x8x16xf32>
    "tpu.trace_stop"() : () -> ()
    %112 = vector.extract_strided_slice %52 {offsets = [0, 0, 48], sizes = [2, 8, 16], strides = [1, 1, 1]} : vector<2x8x64xf32> to vector<2x8x16xf32>
    %113 = arith.truncf %112 : vector<2x8x16xf32> to vector<2x8x16xbf16>
    %114 = vector.extract_strided_slice %53 {offsets = [0, 0, 48], sizes = [2, 8, 16], strides = [1, 1, 1]} : vector<2x8x64xf32> to vector<2x8x16xf32>
    %115 = arith.truncf %114 : vector<2x8x16xf32> to vector<2x8x16xbf16>
    %116 = vector.extract_strided_slice %54 {offsets = [0, 0, 48], sizes = [2, 8, 16], strides = [1, 1, 1]} : vector<2x8x64xf32> to vector<2x8x16xf32>
    %117 = arith.truncf %116 : vector<2x8x16xf32> to vector<2x8x16xbf16>
    "tpu.trace_start"() <{level = 10 : i32, message = "bqd,bkd->bqk"}> : () -> ()
    %cst_45 = arith.constant dense<0.000000e+00> : vector<2x8x8xf32>
    %118 = tpu.matmul %113, %115, %cst_45 {dimension_numbers = #tpu.dot_dimension_numbers<[2], [2], [1], [1], [0, 0, 0, 1, 1, 1], [0], [0]>} : vector<2x8x16xbf16>, vector<2x8x16xbf16>, vector<2x8x8xf32> -> vector<2x8x8xf32>
    "tpu.trace_stop"() : () -> ()
    %cst_46 = arith.constant dense<0xFF800000> : vector<2x8xf32>
    %119 = vector.multi_reduction <maximumf>, %118, %cst_46 [2] : vector<2x8x8xf32> to vector<2x8xf32>
    %120 = vector.shape_cast %119 : vector<2x8xf32> to vector<2x8x1xf32>
    %121 = vector.broadcast %120 : vector<2x8x1xf32> to vector<2x8x8xf32>
    %122 = arith.subf %118, %121 : vector<2x8x8xf32>
    %123 = math.exp %122 : vector<2x8x8xf32>
    %cst_47 = arith.constant dense<0.000000e+00> : vector<2x8xf32>
    %124 = vector.multi_reduction <add>, %123, %cst_47 [2] : vector<2x8x8xf32> to vector<2x8xf32>
    %125 = vector.shape_cast %124 : vector<2x8xf32> to vector<2x8x1xf32>
    %126 = tpu.reciprocal %125 {approx = true} : vector<2x8x1xf32> -> vector<2x8x1xf32>
    %127 = vector.broadcast %126 : vector<2x8x1xf32> to vector<2x8x8xf32>
    %128 = arith.mulf %123, %127 : vector<2x8x8xf32>
    %129 = arith.truncf %128 : vector<2x8x8xf32> to vector<2x8x8xbf16>
    "tpu.trace_start"() <{level = 10 : i32, message = "bqk,bkd->bqd"}> : () -> ()
    %cst_48 = arith.constant dense<0.000000e+00> : vector<2x8x16xf32>
    %130 = tpu.matmul %129, %117, %cst_48 {dimension_numbers = #tpu.dot_dimension_numbers<[2], [1], [1], [2], [0, 0, 0, 1, 1, 2], [0], [0]>} : vector<2x8x8xbf16>, vector<2x8x16xbf16>, vector<2x8x16xf32> -> vector<2x8x16xf32>
    "tpu.trace_stop"() : () -> ()
    %131 = tpu.concatenate %73, %92, %111, %130 in 2 : vector<2x8x16xf32>, vector<2x8x16xf32>, vector<2x8x16xf32>, vector<2x8x16xf32> -> vector<2x8x64xf32>
    %132 = vector.shape_cast %131 : vector<2x8x64xf32> to vector<16x64xf32>
    %133 = arith.truncf %132 : vector<16x64xf32> to vector<16x64xbf16>
    %c0_49 = arith.constant 0 : index
    %c0_50 = arith.constant 0 : index
    %c0_51 = arith.constant 0 : index
    %134 = vector.load %arg10[%c0_49, %c0_50, %c0_51] : memref<1x64x64xbf16, #tpu.memory_space<vmem>>, vector<1x64x64xbf16>
    %135 = vector.shape_cast %134 : vector<1x64x64xbf16> to vector<64x64xbf16>
    %cst_52 = arith.constant dense<0.000000e+00> : vector<16x64xf32>
    %136 = tpu.matmul %133, %135, %cst_52 {dimension_numbers = #tpu.dot_dimension_numbers<[1], [0], [0], [1], [0, 0, 1, 1], [], []>} : vector<16x64xbf16>, vector<64x64xbf16>, vector<16x64xf32> -> vector<16x64xf32>
    %c0_53 = arith.constant 0 : index
    %c0_54 = arith.constant 0 : index
    %c0_55 = arith.constant 0 : index
    %137 = vector.load %arg11[%c0_53, %c0_54, %c0_55] : memref<1x1x64xf32, #tpu.memory_space<vmem>>, vector<1x1x64xf32>
    %138 = vector.shape_cast %137 : vector<1x1x64xf32> to vector<1x64xf32>
    %139 = vector.broadcast %138 : vector<1x64xf32> to vector<16x64xf32>
    %140 = arith.addf %136, %139 : vector<16x64xf32>
    %141 = arith.addf %3, %140 : vector<16x64xf32>
    %c0_56 = arith.constant 0 : index
    %c0_57 = arith.constant 0 : index
    %c0_58 = arith.constant 0 : index
    %142 = vector.load %arg12[%c0_56, %c0_57, %c0_58] : memref<1x1x64xf32, #tpu.memory_space<vmem>>, vector<1x1x64xf32>
    %143 = vector.shape_cast %142 : vector<1x1x64xf32> to vector<1x64xf32>
    %c0_59 = arith.constant 0 : index
    %c0_60 = arith.constant 0 : index
    %c0_61 = arith.constant 0 : index
    %144 = vector.load %arg13[%c0_59, %c0_60, %c0_61] : memref<1x1x64xf32, #tpu.memory_space<vmem>>, vector<1x1x64xf32>
    %145 = vector.shape_cast %144 : vector<1x1x64xf32> to vector<1x64xf32>
    %cst_62 = arith.constant dense<0.000000e+00> : vector<16xf32>
    %146 = vector.multi_reduction <add>, %141, %cst_62 [1] : vector<16x64xf32> to vector<16xf32>
    %147 = vector.shape_cast %146 : vector<16xf32> to vector<16x1xf32>
    %cst_63 = arith.constant 6.400000e+01 : f32
    %148 = vector.broadcast %cst_63 : f32 to vector<16x1xf32>
    %149 = arith.divf %147, %148 : vector<16x1xf32>
    %150 = vector.broadcast %149 : vector<16x1xf32> to vector<16x64xf32>
    %151 = arith.subf %141, %150 : vector<16x64xf32>
    %152 = arith.mulf %151, %151 : vector<16x64xf32>
    %cst_64 = arith.constant dense<0.000000e+00> : vector<16xf32>
    %153 = vector.multi_reduction <add>, %152, %cst_64 [1] : vector<16x64xf32> to vector<16xf32>
    %154 = vector.shape_cast %153 : vector<16xf32> to vector<16x1xf32>
    %cst_65 = arith.constant 6.400000e+01 : f32
    %155 = vector.broadcast %cst_65 : f32 to vector<16x1xf32>
    %156 = arith.divf %154, %155 : vector<16x1xf32>
    %157 = vector.broadcast %149 : vector<16x1xf32> to vector<16x64xf32>
    %158 = arith.subf %141, %157 : vector<16x64xf32>
    %cst_66 = arith.constant 9.99999974E-6 : f32
    %159 = vector.broadcast %cst_66 : f32 to vector<16x1xf32>
    %160 = arith.addf %156, %159 : vector<16x1xf32>
    %161 = math.rsqrt %160 : vector<16x1xf32>
    %162 = vector.broadcast %161 : vector<16x1xf32> to vector<16x64xf32>
    %163 = arith.mulf %158, %162 : vector<16x64xf32>
    %164 = vector.broadcast %143 : vector<1x64xf32> to vector<16x64xf32>
    %165 = arith.mulf %163, %164 : vector<16x64xf32>
    %166 = vector.broadcast %145 : vector<1x64xf32> to vector<16x64xf32>
    %167 = arith.addf %165, %166 : vector<16x64xf32>
    %168 = arith.truncf %167 : vector<16x64xf32> to vector<16x64xbf16>
    %c0_67 = arith.constant 0 : index
    %c0_68 = arith.constant 0 : index
    %c0_69 = arith.constant 0 : index
    %169 = vector.load %arg14[%c0_67, %c0_68, %c0_69] : memref<1x64x256xbf16, #tpu.memory_space<vmem>>, vector<1x64x256xbf16>
    %170 = vector.shape_cast %169 : vector<1x64x256xbf16> to vector<64x256xbf16>
    %cst_70 = arith.constant dense<0.000000e+00> : vector<16x256xf32>
    %171 = tpu.matmul %168, %170, %cst_70 {dimension_numbers = #tpu.dot_dimension_numbers<[1], [0], [0], [1], [0, 0, 1, 1], [], []>} : vector<16x64xbf16>, vector<64x256xbf16>, vector<16x256xf32> -> vector<16x256xf32>
    %c0_71 = arith.constant 0 : index
    %c0_72 = arith.constant 0 : index
    %c0_73 = arith.constant 0 : index
    %172 = vector.load %arg15[%c0_71, %c0_72, %c0_73] : memref<1x1x256xf32, #tpu.memory_space<vmem>>, vector<1x1x256xf32>
    %173 = vector.shape_cast %172 : vector<1x1x256xf32> to vector<1x256xf32>
    %174 = vector.broadcast %173 : vector<1x256xf32> to vector<16x256xf32>
    %175 = arith.addf %171, %174 : vector<16x256xf32>
    %cst_74 = arith.constant 0.000000e+00 : f32
    %176 = vector.broadcast %cst_74 : f32 to vector<16x256xf32>
    %177 = arith.maximumf %175, %176 : vector<16x256xf32>
    %178 = arith.truncf %177 : vector<16x256xf32> to vector<16x256xbf16>
    %c0_75 = arith.constant 0 : index
    %c0_76 = arith.constant 0 : index
    %c0_77 = arith.constant 0 : index
    %179 = vector.load %arg16[%c0_75, %c0_76, %c0_77] : memref<1x256x64xbf16, #tpu.memory_space<vmem>>, vector<1x256x64xbf16>
    %180 = vector.shape_cast %179 : vector<1x256x64xbf16> to vector<256x64xbf16>
    %cst_78 = arith.constant dense<0.000000e+00> : vector<16x64xf32>
    %181 = tpu.matmul %178, %180, %cst_78 {dimension_numbers = #tpu.dot_dimension_numbers<[1], [0], [0], [1], [0, 0, 1, 1], [], []>} : vector<16x256xbf16>, vector<256x64xbf16>, vector<16x64xf32> -> vector<16x64xf32>
    %c0_79 = arith.constant 0 : index
    %c0_80 = arith.constant 0 : index
    %c0_81 = arith.constant 0 : index
    %182 = vector.load %arg17[%c0_79, %c0_80, %c0_81] : memref<1x1x64xf32, #tpu.memory_space<vmem>>, vector<1x1x64xf32>
    %183 = vector.shape_cast %182 : vector<1x1x64xf32> to vector<1x64xf32>
    %184 = vector.broadcast %183 : vector<1x64xf32> to vector<16x64xf32>
    %185 = arith.addf %181, %184 : vector<16x64xf32>
    %186 = arith.addf %141, %185 : vector<16x64xf32>
    %c0_82 = arith.constant 0 : index
    %c0_83 = arith.constant 0 : index
    %187 = vector.load %arg21[%c0_82, %c0_83] : memref<16x64xf32, #tpu.memory_space<vmem>>, vector<16x64xf32>
    tpu.vector_store %arg21[%c0_82, %c0_83], %186 {strides = array<i32>} : memref<16x64xf32, #tpu.memory_space<vmem>>, vector<16x64xf32>,
    %c1_i32 = arith.constant 1 : i32
    %188 = arith.cmpi eq, %arg0, %c1_i32 : i32
    %189 = arith.extui %188 : i1 to i32
    %c0_i32_84 = arith.constant 0 : i32
    %190 = arith.cmpi ne, %189, %c0_i32_84 : i32
    scf.if %190 {
      %c0_85 = arith.constant 0 : index
      %c0_86 = arith.constant 0 : index
      %191 = vector.load %arg18[%c0_85, %c0_86] : memref<1x64xf32, #tpu.memory_space<vmem>>, vector<1x64xf32>
      %c0_87 = arith.constant 0 : index
      %c0_88 = arith.constant 0 : index
      %192 = vector.load %arg19[%c0_87, %c0_88] : memref<1x64xf32, #tpu.memory_space<vmem>>, vector<1x64xf32>
      %cst_89 = arith.constant dense<0.000000e+00> : vector<16xf32>
      %193 = vector.multi_reduction <add>, %186, %cst_89 [1] : vector<16x64xf32> to vector<16xf32>
      %194 = vector.shape_cast %193 : vector<16xf32> to vector<16x1xf32>
      %cst_90 = arith.constant 6.400000e+01 : f32
      %195 = vector.broadcast %cst_90 : f32 to vector<16x1xf32>
      %196 = arith.divf %194, %195 : vector<16x1xf32>
      %197 = vector.broadcast %196 : vector<16x1xf32> to vector<16x64xf32>
      %198 = arith.subf %186, %197 : vector<16x64xf32>
      %199 = arith.mulf %198, %198 : vector<16x64xf32>
      %cst_91 = arith.constant dense<0.000000e+00> : vector<16xf32>
      %200 = vector.multi_reduction <add>, %199, %cst_91 [1] : vector<16x64xf32> to vector<16xf32>
      %201 = vector.shape_cast %200 : vector<16xf32> to vector<16x1xf32>
      %cst_92 = arith.constant 6.400000e+01 : f32
      %202 = vector.broadcast %cst_92 : f32 to vector<16x1xf32>
      %203 = arith.divf %201, %202 : vector<16x1xf32>
      %204 = vector.broadcast %196 : vector<16x1xf32> to vector<16x64xf32>
      %205 = arith.subf %186, %204 : vector<16x64xf32>
      %cst_93 = arith.constant 9.99999974E-6 : f32
      %206 = vector.broadcast %cst_93 : f32 to vector<16x1xf32>
      %207 = arith.addf %203, %206 : vector<16x1xf32>
      %208 = math.rsqrt %207 : vector<16x1xf32>
      %209 = vector.broadcast %208 : vector<16x1xf32> to vector<16x64xf32>
      %210 = arith.mulf %205, %209 : vector<16x64xf32>
      %211 = vector.broadcast %191 : vector<1x64xf32> to vector<16x64xf32>
      %212 = arith.mulf %210, %211 : vector<16x64xf32>
      %213 = vector.broadcast %192 : vector<1x64xf32> to vector<16x64xf32>
      %214 = arith.addf %212, %213 : vector<16x64xf32>
      %c0_94 = arith.constant 0 : index
      %c0_95 = arith.constant 0 : index
      %215 = vector.load %arg20[%c0_94, %c0_95] : memref<16x64xf32, #tpu.memory_space<vmem>>, vector<16x64xf32>
      tpu.vector_store %arg20[%c0_94, %c0_95], %214 {strides = array<i32>} : memref<16x64xf32, #tpu.memory_space<vmem>>, vector<16x64xf32>,
    } else {
    }
    return
  }
  func.func @transform_0(%arg0: i32) -> (i32, i32) {
    %c0_i32 = arith.constant 0 : i32
    %c0_i32_0 = arith.constant 0 : i32
    %c0_i32_1 = arith.constant 0 : i32
    return %c0_i32, %c0_i32_0 : i32, i32
  }
  func.func @transform_1(%arg0: i32) -> (i32, i32, i32) {
    %c0_i32 = arith.constant 0 : i32
    %c0_i32_0 = arith.constant 0 : i32
    %c0_i32_1 = arith.constant 0 : i32
    return %arg0, %c0_i32, %c0_i32_0 : i32, i32, i32
  }
  func.func @transform_2(%arg0: i32) -> (i32, i32, i32) {
    %c0_i32 = arith.constant 0 : i32
    %c0_i32_0 = arith.constant 0 : i32
    %c0_i32_1 = arith.constant 0 : i32
    return %arg0, %c0_i32, %c0_i32_0 : i32, i32, i32
  }
  func.func @transform_3(%arg0: i32) -> (i32, i32, i32) {
    %c0_i32 = arith.constant 0 : i32
    %c0_i32_0 = arith.constant 0 : i32
    %c0_i32_1 = arith.constant 0 : i32
    return %arg0, %c0_i32, %c0_i32_0 : i32, i32, i32
  }
  func.func @transform_4(%arg0: i32) -> (i32, i32, i32) {
    %c0_i32 = arith.constant 0 : i32
    %c0_i32_0 = arith.constant 0 : i32
    %c0_i32_1 = arith.constant 0 : i32
    return %arg0, %c0_i32, %c0_i32_0 : i32, i32, i32
  }
  func.func @transform_5(%arg0: i32) -> (i32, i32, i32) {
    %c0_i32 = arith.constant 0 : i32
    %c0_i32_0 = arith.constant 0 : i32
    %c0_i32_1 = arith.constant 0 : i32
    return %arg0, %c0_i32, %c0_i32_0 : i32, i32, i32
  }
  func.func @transform_6(%arg0: i32) -> (i32, i32, i32) {
    %c0_i32 = arith.constant 0 : i32
    %c0_i32_0 = arith.constant 0 : i32
    %c0_i32_1 = arith.constant 0 : i32
    return %arg0, %c0_i32, %c0_i32_0 : i32, i32, i32
  }
  func.func @transform_7(%arg0: i32) -> (i32, i32, i32) {
    %c0_i32 = arith.constant 0 : i32
    %c0_i32_0 = arith.constant 0 : i32
    %c0_i32_1 = arith.constant 0 : i32
    return %arg0, %c0_i32, %c0_i32_0 : i32, i32, i32
  }
  func.func @transform_8(%arg0: i32) -> (i32, i32, i32) {
    %c0_i32 = arith.constant 0 : i32
    %c0_i32_0 = arith.constant 0 : i32
    %c0_i32_1 = arith.constant 0 : i32
    return %arg0, %c0_i32, %c0_i32_0 : i32, i32, i32
  }
  func.func @transform_9(%arg0: i32) -> (i32, i32, i32) {
    %c0_i32 = arith.constant 0 : i32
    %c0_i32_0 = arith.constant 0 : i32
    %c0_i32_1 = arith.constant 0 : i32
    return %arg0, %c0_i32, %c0_i32_0 : i32, i32, i32
  }
  func.func @transform_10(%arg0: i32) -> (i32, i32, i32) {
    %c0_i32 = arith.constant 0 : i32
    %c0_i32_0 = arith.constant 0 : i32
    %c0_i32_1 = arith.constant 0 : i32
    return %arg0, %c0_i32, %c0_i32_0 : i32, i32, i32
  }
  func.func @transform_11(%arg0: i32) -> (i32, i32, i32) {
    %c0_i32 = arith.constant 0 : i32
    %c0_i32_0 = arith.constant 0 : i32
    %c0_i32_1 = arith.constant 0 : i32
    return %arg0, %c0_i32, %c0_i32_0 : i32, i32, i32
  }
  func.func @transform_12(%arg0: i32) -> (i32, i32, i32) {
    %c0_i32 = arith.constant 0 : i32
    %c0_i32_0 = arith.constant 0 : i32
    %c0_i32_1 = arith.constant 0 : i32
    return %arg0, %c0_i32, %c0_i32_0 : i32, i32, i32
  }
  func.func @transform_13(%arg0: i32) -> (i32, i32, i32) {
    %c0_i32 = arith.constant 0 : i32
    %c0_i32_0 = arith.constant 0 : i32
    %c0_i32_1 = arith.constant 0 : i32
    return %arg0, %c0_i32, %c0_i32_0 : i32, i32, i32
  }
  func.func @transform_14(%arg0: i32) -> (i32, i32, i32) {
    %c0_i32 = arith.constant 0 : i32
    %c0_i32_0 = arith.constant 0 : i32
    %c0_i32_1 = arith.constant 0 : i32
    return %arg0, %c0_i32, %c0_i32_0 : i32, i32, i32
  }
  func.func @transform_15(%arg0: i32) -> (i32, i32, i32) {
    %c0_i32 = arith.constant 0 : i32
    %c0_i32_0 = arith.constant 0 : i32
    %c0_i32_1 = arith.constant 0 : i32
    return %arg0, %c0_i32, %c0_i32_0 : i32, i32, i32
  }
  func.func @transform_16(%arg0: i32) -> (i32, i32, i32) {
    %c0_i32 = arith.constant 0 : i32
    %c0_i32_0 = arith.constant 0 : i32
    %c0_i32_1 = arith.constant 0 : i32
    return %arg0, %c0_i32, %c0_i32_0 : i32, i32, i32
  }
  func.func @transform_17(%arg0: i32) -> (i32, i32) {
    %c0_i32 = arith.constant 0 : i32
    %c0_i32_0 = arith.constant 0 : i32
    %c0_i32_1 = arith.constant 0 : i32
    return %c0_i32, %c0_i32_0 : i32, i32
  }
  func.func @transform_18(%arg0: i32) -> (i32, i32) {
    %c0_i32 = arith.constant 0 : i32
    %c0_i32_0 = arith.constant 0 : i32
    %c0_i32_1 = arith.constant 0 : i32
    return %c0_i32, %c0_i32_0 : i32, i32
  }
  func.func @transform_19(%arg0: i32) -> (i32, i32) {
    %c0_i32 = arith.constant 0 : i32
    %c0_i32_0 = arith.constant 0 : i32
    %c0_i32_1 = arith.constant 0 : i32
    return %c0_i32, %c0_i32_0 : i32, i32
  }
}

</mosaic_0001>

<llo_original>
// kernel: tpu_custom_call.1
$region0: #{tpu_custom_call.1}
  #allocation0 [shape = 'u32[]', space=smem, size = 0x4, offset = 0x4, fixed_abs, tag = 'smem constant byte address 0x4 - core index']
  #allocation1 [shape = 'u32[72,128]{1,0:T(1,128)}', space=vmem, size = 0x9000, scoped, tag = 'internal scratch']
  #allocation2 [shape = 'f32[16,64]{1,0:T(8,128)}', space=vmem, size = 0x2000, scoped, tag = 'scratch operand']
  %s0 = inlined_call_operand.hbm [shape: f32[16,64], index: 0, kind: input, shape index: {}]
  %s1 = inlined_call_operand.hbm [shape: f32[2,1,64], index: 1, kind: input, shape index: {}]
  %s2 = inlined_call_operand.hbm [shape: f32[2,1,64], index: 2, kind: input, shape index: {}]
  %s3 = inlined_call_operand.vmem [shape: bf16[2,64,64], index: 3, kind: input, shape index: {}]
  %s4 = inlined_call_operand.hbm [shape: f32[2,1,64], index: 4, kind: input, shape index: {}]
  %s5 = inlined_call_operand.vmem [shape: bf16[2,64,64], index: 5, kind: input, shape index: {}]
  %s6 = inlined_call_operand.hbm [shape: f32[2,1,64], index: 6, kind: input, shape index: {}]
  %s7 = inlined_call_operand.vmem [shape: bf16[2,64,64], index: 7, kind: input, shape index: {}]
  %s8 = inlined_call_operand.hbm [shape: f32[2,1,64], index: 8, kind: input, shape index: {}]
  %s9 = inlined_call_operand.vmem [shape: bf16[2,64,64], index: 9, kind: input, shape index: {}]
  %s10 = inlined_call_operand.vmem [shape: f32[2,1,64], index: 10, kind: input, shape index: {}]
  %s11 = inlined_call_operand.vmem [shape: f32[2,1,64], index: 11, kind: input, shape index: {}]
  %s12 = inlined_call_operand.hbm [shape: f32[2,1,64], index: 12, kind: input, shape index: {}]
  %s13 = inlined_call_operand.vmem [shape: bf16[2,64,256], index: 13, kind: input, shape index: {}]
  %s14 = inlined_call_operand.vmem [shape: f32[2,1,256], index: 14, kind: input, shape index: {}]
  %s15 = inlined_call_operand.vmem [shape: bf16[2,256,64], index: 15, kind: input, shape index: {}]
  %s16 = inlined_call_operand.vmem [shape: f32[2,1,64], index: 16, kind: input, shape index: {}]
  %s17 = inlined_call_operand.vmem [shape: f32[1,64], index: 17, kind: input, shape index: {}]
  %s18 = inlined_call_operand.vmem [shape: f32[1,64], index: 18, kind: input, shape index: {}]
  %s19 = inlined_call_operand.hbm [shape: f32[16,64], index: 19, kind: output, shape index: {}]
  %s20 = sld [smem:[#allocation0]]
  $region145: #{tpu_custom_call.1} parent=0
    _
  %s22 = ssub.s32 1, %s20
  %s23 = scalar_select 0, %s22, %s20
  $region1: #{tpu_custom_call.1} parent=0
    #allocation3 [shape = 'u8[8192]{0}', space=vmem, size = 0x2000, scoped, tag = 'input window, operand 0, single buffered']
    #allocation4 [shape = 's32[2]{0}', space=sflag, size = 0x8, scoped, tag = 'scoped memory for tpu_custom_call.1']
    #allocation5 [shape = 's32[2]{0}', space=sflag, size = 0x8, scoped, tag = 'scoped memory for tpu_custom_call.1']
    #allocation6 [shape = 'u8[1024]{0}', space=vmem, size = 0x400, scoped, tag = 'input window, operand 1']
    #allocation7 [shape = 's32[2]{0}', space=sflag, size = 0x8, scoped, tag = 'scoped memory for tpu_custom_call.1']
    #allocation8 [shape = 'u8[1024]{0}', space=vmem, size = 0x400, scoped, tag = 'input window, operand 2']
    #allocation9 [shape = 'u8[1024]{0}', space=vmem, size = 0x400, scoped, tag = 'input window, operand 4']
    #allocation10 [shape = 's32[2]{0}', space=sflag, size = 0x8, scoped, tag = 'scoped memory for tpu_custom_call.1']
    #allocation11 [shape = 'u8[1024]{0}', space=vmem, size = 0x400, scoped, tag = 'input window, operand 6']
    #allocation12 [shape = 'u8[1024]{0}', space=vmem, size = 0x400, scoped, tag = 'input window, operand 8']
    #allocation13 [shape = 's32[2]{0}', space=sflag, size = 0x8, scoped, tag = 'scoped memory for tpu_custom_call.1']
    #allocation14 [shape = 'u8[1024]{0}', space=vmem, size = 0x400, scoped, tag = 'input window, operand 12']
    #allocation15 [shape = 'u8[8192]{0}', space=vmem, size = 0x2000, scoped, tag = 'output window, operand 0, single buffered']
    %24 = vsyncpa [#allocation4], 0
    %25 = vsyncpa [#allocation7], 0
    %s26 = scalar_lea.sflag [#allocation7], 1
    %27 = vsyncpa %s26, 0
    %28 = vsyncpa [#allocation10], 0
    %s29 = scalar_lea.sflag [#allocation10], 1
    %30 = vsyncpa %s29, 0
    %31 = vsyncpa [#allocation13], 0
    %s32 = scalar_lea.sflag [#allocation13], 1
    %33 = vsyncpa %s32, 0
    %34 = vsyncpa [#allocation5], 0
    loop: start=0, step=1, limit=4
    $region2: #{tpu_custom_call.1} parent=1 // loop_pre_header
      _
    $region3: #{tpu_custom_call.1} parent=1 // loop_header
      %s36 = sphi 0, %s40
      %p37 = scmp.ge.s32.totalorder %s36, 4
      %s44 = sphi 0, %s44
      %s46 = sphi 0, %s44
      %s47 = sphi 0, %s46
      %s61 = sphi 0, %s47
      %s67 = sphi 0, %s69
      %s70 = sphi 0, %s67
      %s71 = sphi 0, %s70
      %s87 = sphi 0, %s71
      %s93 = sphi 0, %s95
      %s96 = sphi 0, %s93
      %s97 = sphi 0, %s96
      %s113 = sphi 0, %s97
      %s119 = sphi 0, %s121
      %s122 = sphi 0, %s119
      %s123 = sphi 0, %s122
      %s139 = sphi 0, %s123
      %s145 = sphi 0, %s147
      %s148 = sphi 0, %s145
      %s149 = sphi 0, %s148
      %s165 = sphi 0, %s149
      %s171 = sphi 0, %s173
      %s174 = sphi 0, %s171
      %s175 = sphi 0, %s174
      %s191 = sphi 0, %s175
      %s197 = sphi 0, %s199
      %s200 = sphi 0, %s197
      %s201 = sphi 0, %s200
      %s217 = sphi 0, %s201
      %s223 = sphi 0, %s225
      %s226 = sphi 0, %s223
      %s227 = sphi 0, %s226
      %s243 = sphi 0, %s227
      %s249 = sphi 0, %s251
      %s252 = sphi 0, %s249
      %s253 = sphi 0, %s252
      %s269 = sphi 0, %s253
      %s275 = sphi 0, %s277
      %s278 = sphi 0, %s275
      %s279 = sphi 0, %s278
      %s295 = sphi 0, %s279
      %s301 = sphi 0, %s303
      %s304 = sphi 0, %s301
      %s305 = sphi 0, %s304
      %s321 = sphi 0, %s305
      %s327 = sphi 0, %s329
      %s330 = sphi 0, %s327
      %s331 = sphi 0, %s330
      %s347 = sphi 0, %s331
      %s353 = sphi 0, %s355
      %s356 = sphi 0, %s353
      %s357 = sphi 0, %s356
      %s373 = sphi 0, %s357
      %s379 = sphi 0, %s381
      %s382 = sphi 0, %s379
      %s383 = sphi 0, %s382
      %s399 = sphi 0, %s383
      %s405 = sphi 0, %s407
      %s408 = sphi 0, %s405
      %s409 = sphi 0, %s408
      %s425 = sphi 0, %s409
      %s431 = sphi 0, %s433
      %s434 = sphi 0, %s431
      %s435 = sphi 0, %s434
      %s451 = sphi 0, %s435
      %s457 = sphi 0, %s459
      %s460 = sphi 0, %s457
      %s461 = sphi 0, %s460
      %s477 = sphi 0, %s461
      %s481 = sphi 0, %s481
      %s483 = sphi 0, %s481
      %s484 = sphi 0, %s483
      %s498 = sphi 0, %s484
      %s502 = sphi 0, %s502
      %s504 = sphi 0, %s502
      %s505 = sphi 0, %s504
      %s519 = sphi 0, %s505
      %s523 = sphi 0, %s523
      %s525 = sphi 0, %s523
      %s526 = sphi 0, %s525
      %s540 = sphi 0, %s526
    $region4: #{tpu_custom_call.1} parent=1 // loop_header_branch
      %39 = sbr.rel (%p37) target = $region8
    $region5: #{tpu_custom_call.1} parent=1 // loop_body
      %s41 = ssub.s32 %s36, 1
      %s42 = ssub.s32 %s36, 2
      %s43 = sadd.s32 %s36, 1
      %s45 = sadd.s32 %s44, 1
      %p48 = scmp.eq.s32.totalorder %s36, 1
      %p49 = scmp.ne.s32.totalorder %s44, %s46
      %p50 = scmp.eq.s32.totalorder %s36, 0
      %p51 = por %p49, %p50
      %p52 = scmp.ne.s32.totalorder %s44, %s46
      %p53 = scmp.eq.s32.totalorder %s41, 1
      %p54 = por %p52, %p53
      %p55 = scmp.ne.s32.totalorder %s46, %s47
      %p56 = scmp.eq.s32.totalorder %s41, 0
      %p57 = por %p55, %p56
      %p58 = scmp.ne.s32.totalorder %s46, %s47
      %p59 = scmp.eq.s32.totalorder %s42, 1
      %p60 = por %p58, %p59
      %p62 = scmp.ne.s32.totalorder %s47, %s61
      %p63 = scmp.eq.s32.totalorder %s42, 0
      %p64 = por %p62, %p63
      %s65 = ssub.s32 %s36, %s43
      %p66 = scmp.eq.s32.totalorder %s65, 0
      %s68 = sadd.s32 %s67, 1
      %s69 = scalar_select %p66, %s67, %s68
      %p72 = pneg %p66
      %p73 = scmp.eq.s32.totalorder %s36, 1
      %p74 = por %p72, %p73
      %p75 = scmp.ne.s32.totalorder %s67, %s70
      %p76 = scmp.eq.s32.totalorder %s36, 0
      %p77 = por %p75, %p76
      %p78 = scmp.ne.s32.totalorder %s67, %s70
      %p79 = scmp.eq.s32.totalorder %s41, 1
      %p80 = por %p78, %p79
      %p81 = scmp.ne.s32.totalorder %s70, %s71
      %p82 = scmp.eq.s32.totalorder %s41, 0
      %p83 = por %p81, %p82
      %p84 = scmp.ne.s32.totalorder %s70, %s71
      %p85 = scmp.eq.s32.totalorder %s42, 1
      %p86 = por %p84, %p85
      %p88 = scmp.ne.s32.totalorder %s71, %s87
      %p89 = scmp.eq.s32.totalorder %s42, 0
      %p90 = por %p88, %p89
      %s91 = ssub.s32 %s36, %s43
      %p92 = scmp.eq.s32.totalorder %s91, 0
      %s94 = sadd.s32 %s93, 1
      %s95 = scalar_select %p92, %s93, %s94
      %p98 = pneg %p92
      %p99 = scmp.eq.s32.totalorder %s36, 1
      %p100 = por %p98, %p99
      %p101 = scmp.ne.s32.totalorder %s93, %s96
      %p102 = scmp.eq.s32.totalorder %s36, 0
      %p103 = por %p101, %p102
      %p104 = scmp.ne.s32.totalorder %s93, %s96
      %p105 = scmp.eq.s32.totalorder %s41, 1
      %p106 = por %p104, %p105
      %p107 = scmp.ne.s32.totalorder %s96, %s97
      %p108 = scmp.eq.s32.totalorder %s41, 0
      %p109 = por %p107, %p108
      %p110 = scmp.ne.s32.totalorder %s96, %s97
      %p111 = scmp.eq.s32.totalorder %s42, 1
      %p112 = por %p110, %p111
      %p114 = scmp.ne.s32.totalorder %s97, %s113
      %p115 = scmp.eq.s32.totalorder %s42, 0
      %p116 = por %p114, %p115
      %s117 = ssub.s32 %s36, %s43
      %p118 = scmp.eq.s32.totalorder %s117, 0
      %s120 = sadd.s32 %s119, 1
      %s121 = scalar_select %p118, %s119, %s120
      %p124 = pneg %p118
      %p125 = scmp.eq.s32.totalorder %s36, 1
      %p126 = por %p124, %p125
      %p127 = scmp.ne.s32.totalorder %s119, %s122
      %p128 = scmp.eq.s32.totalorder %s36, 0
      %p129 = por %p127, %p128
      %p130 = scmp.ne.s32.totalorder %s119, %s122
      %p131 = scmp.eq.s32.totalorder %s41, 1
      %p132 = por %p130, %p131
      %p133 = scmp.ne.s32.totalorder %s122, %s123
      %p134 = scmp.eq.s32.totalorder %s41, 0
      %p135 = por %p133, %p134
      %p136 = scmp.ne.s32.totalorder %s122, %s123
      %p137 = scmp.eq.s32.totalorder %s42, 1
      %p138 = por %p136, %p137
      %p140 = scmp.ne.s32.totalorder %s123, %s139
      %p141 = scmp.eq.s32.totalorder %s42, 0
      %p142 = por %p140, %p141
      %s143 = ssub.s32 %s36, %s43
      %p144 = scmp.eq.s32.totalorder %s143, 0
      %s146 = sadd.s32 %s145, 1
      %s147 = scalar_select %p144, %s145, %s146
      %p150 = pneg %p144
      %p151 = scmp.eq.s32.totalorder %s36, 1
      %p152 = por %p150, %p151
      %p153 = scmp.ne.s32.totalorder %s145, %s148
      %p154 = scmp.eq.s32.totalorder %s36, 0
      %p155 = por %p153, %p154
      %p156 = scmp.ne.s32.totalorder %s145, %s148
      %p157 = scmp.eq.s32.totalorder %s41, 1
      %p158 = por %p156, %p157
      %p159 = scmp.ne.s32.totalorder %s148, %s149
      %p160 = scmp.eq.s32.totalorder %s41, 0
      %p161 = por %p159, %p160
      %p162 = scmp.ne.s32.totalorder %s148, %s149
      %p163 = scmp.eq.s32.totalorder %s42, 1
      %p164 = por %p162, %p163
      %p166 = scmp.ne.s32.totalorder %s149, %s165
      %p167 = scmp.eq.s32.totalorder %s42, 0
      %p168 = por %p166, %p167
      %s169 = ssub.s32 %s36, %s43
      %p170 = scmp.eq.s32.totalorder %s169, 0
      %s172 = sadd.s32 %s171, 1
      %s173 = scalar_select %p170, %s171, %s172
      %p176 = pneg %p170
      %p177 = scmp.eq.s32.totalorder %s36, 1
      %p178 = por %p176, %p177
      %p179 = scmp.ne.s32.totalorder %s171, %s174
      %p180 = scmp.eq.s32.totalorder %s36, 0
      %p181 = por %p179, %p180
      %p182 = scmp.ne.s32.totalorder %s171, %s174
      %p183 = scmp.eq.s32.totalorder %s41, 1
      %p184 = por %p182, %p183
      %p185 = scmp.ne.s32.totalorder %s174, %s175
      %p186 = scmp.eq.s32.totalorder %s41, 0
      %p187 = por %p185, %p186
      %p188 = scmp.ne.s32.totalorder %s174, %s175
      %p189 = scmp.eq.s32.totalorder %s42, 1
      %p190 = por %p188, %p189
      %p192 = scmp.ne.s32.totalorder %s175, %s191
      %p193 = scmp.eq.s32.totalorder %s42, 0
      %p194 = por %p192, %p193
      %s195 = ssub.s32 %s36, %s43
      %p196 = scmp.eq.s32.totalorder %s195, 0
      %s198 = sadd.s32 %s197, 1
      %s199 = scalar_select %p196, %s197, %s198
      %p202 = pneg %p196
      %p203 = scmp.eq.s32.totalorder %s36, 1
      %p204 = por %p202, %p203
      %p205 = scmp.ne.s32.totalorder %s197, %s200
      %p206 = scmp.eq.s32.totalorder %s36, 0
      %p207 = por %p205, %p206
      %p208 = scmp.ne.s32.totalorder %s197, %s200
      %p209 = scmp.eq.s32.totalorder %s41, 1
      %p210 = por %p208, %p209
      %p211 = scmp.ne.s32.totalorder %s200, %s201
      %p212 = scmp.eq.s32.totalorder %s41, 0
      %p213 = por %p211, %p212
      %p214 = scmp.ne.s32.totalorder %s200, %s201
      %p215 = scmp.eq.s32.totalorder %s42, 1
      %p216 = por %p214, %p215
      %p218 = scmp.ne.s32.totalorder %s201, %s217
      %p219 = scmp.eq.s32.totalorder %s42, 0
      %p220 = por %p218, %p219
      %s221 = ssub.s32 %s36, %s43
      %p222 = scmp.eq.s32.totalorder %s221, 0
      %s224 = sadd.s32 %s223, 1
      %s225 = scalar_select %p222, %s223, %s224
      %p228 = pneg %p222
      %p229 = scmp.eq.s32.totalorder %s36, 1
      %p230 = por %p228, %p229
      %p231 = scmp.ne.s32.totalorder %s223, %s226
      %p232 = scmp.eq.s32.totalorder %s36, 0
      %p233 = por %p231, %p232
      %p234 = scmp.ne.s32.totalorder %s223, %s226
      %p235 = scmp.eq.s32.totalorder %s41, 1
      %p236 = por %p234, %p235
      %p237 = scmp.ne.s32.totalorder %s226, %s227
      %p238 = scmp.eq.s32.totalorder %s41, 0
      %p239 = por %p237, %p238
      %p240 = scmp.ne.s32.totalorder %s226, %s227
      %p241 = scmp.eq.s32.totalorder %s42, 1
      %p242 = por %p240, %p241
      %p244 = scmp.ne.s32.totalorder %s227, %s243
      %p245 = scmp.eq.s32.totalorder %s42, 0
      %p246 = por %p244, %p245
      %s247 = ssub.s32 %s36, %s43
      %p248 = scmp.eq.s32.totalorder %s247, 0
      %s250 = sadd.s32 %s249, 1
      %s251 = scalar_select %p248, %s249, %s250
      %p254 = pneg %p248
      %p255 = scmp.eq.s32.totalorder %s36, 1
      %p256 = por %p254, %p255
      %p257 = scmp.ne.s32.totalorder %s249, %s252
      %p258 = scmp.eq.s32.totalorder %s36, 0
      %p259 = por %p257, %p258
      %p260 = scmp.ne.s32.totalorder %s249, %s252
      %p261 = scmp.eq.s32.totalorder %s41, 1
      %p262 = por %p260, %p261
      %p263 = scmp.ne.s32.totalorder %s252, %s253
      %p264 = scmp.eq.s32.totalorder %s41, 0
      %p265 = por %p263, %p264
      %p266 = scmp.ne.s32.totalorder %s252, %s253
      %p267 = scmp.eq.s32.totalorder %s42, 1
      %p268 = por %p266, %p267
      %p270 = scmp.ne.s32.totalorder %s253, %s269
      %p271 = scmp.eq.s32.totalorder %s42, 0
      %p272 = por %p270, %p271
      %s273 = ssub.s32 %s36, %s43
      %p274 = scmp.eq.s32.totalorder %s273, 0
      %s276 = sadd.s32 %s275, 1
      %s277 = scalar_select %p274, %s275, %s276
      %p280 = pneg %p274
      %p281 = scmp.eq.s32.totalorder %s36, 1
      %p282 = por %p280, %p281
      %p283 = scmp.ne.s32.totalorder %s275, %s278
      %p284 = scmp.eq.s32.totalorder %s36, 0
      %p285 = por %p283, %p284
      %p286 = scmp.ne.s32.totalorder %s275, %s278
      %p287 = scmp.eq.s32.totalorder %s41, 1
      %p288 = por %p286, %p287
      %p289 = scmp.ne.s32.totalorder %s278, %s279
      %p290 = scmp.eq.s32.totalorder %s41, 0
      %p291 = por %p289, %p290
      %p292 = scmp.ne.s32.totalorder %s278, %s279
      %p293 = scmp.eq.s32.totalorder %s42, 1
      %p294 = por %p292, %p293
      %p296 = scmp.ne.s32.totalorder %s279, %s295
      %p297 = scmp.eq.s32.totalorder %s42, 0
      %p298 = por %p296, %p297
      %s299 = ssub.s32 %s36, %s43
      %p300 = scmp.eq.s32.totalorder %s299, 0
      %s302 = sadd.s32 %s301, 1
      %s303 = scalar_select %p300, %s301, %s302
      %p306 = pneg %p300
      %p307 = scmp.eq.s32.totalorder %s36, 1
      %p308 = por %p306, %p307
      %p309 = scmp.ne.s32.totalorder %s301, %s304
      %p310 = scmp.eq.s32.totalorder %s36, 0
      %p311 = por %p309, %p310
      %p312 = scmp.ne.s32.totalorder %s301, %s304
      %p313 = scmp.eq.s32.totalorder %s41, 1
      %p314 = por %p312, %p313
      %p315 = scmp.ne.s32.totalorder %s304, %s305
      %p316 = scmp.eq.s32.totalorder %s41, 0
      %p317 = por %p315, %p316
      %p318 = scmp.ne.s32.totalorder %s304, %s305
      %p319 = scmp.eq.s32.totalorder %s42, 1
      %p320 = por %p318, %p319
      %p322 = scmp.ne.s32.totalorder %s305, %s321
      %p323 = scmp.eq.s32.totalorder %s42, 0
      %p324 = por %p322, %p323
      %s325 = ssub.s32 %s36, %s43
      %p326 = scmp.eq.s32.totalorder %s325, 0
      %s328 = sadd.s32 %s327, 1
      %s329 = scalar_select %p326, %s327, %s328
      %p332 = pneg %p326
      %p333 = scmp.eq.s32.totalorder %s36, 1
      %p334 = por %p332, %p333
      %p335 = scmp.ne.s32.totalorder %s327, %s330
      %p336 = scmp.eq.s32.totalorder %s36, 0
      %p337 = por %p335, %p336
      %p338 = scmp.ne.s32.totalorder %s327, %s330
      %p339 = scmp.eq.s32.totalorder %s41, 1
      %p340 = por %p338, %p339
      %p341 = scmp.ne.s32.totalorder %s330, %s331
      %p342 = scmp.eq.s32.totalorder %s41, 0
      %p343 = por %p341, %p342
      %p344 = scmp.ne.s32.totalorder %s330, %s331
      %p345 = scmp.eq.s32.totalorder %s42, 1
      %p346 = por %p344, %p345
      %p348 = scmp.ne.s32.totalorder %s331, %s347
      %p349 = scmp.eq.s32.totalorder %s42, 0
      %p350 = por %p348, %p349
      %s351 = ssub.s32 %s36, %s43
      %p352 = scmp.eq.s32.totalorder %s351, 0
      %s354 = sadd.s32 %s353, 1
      %s355 = scalar_select %p352, %s353, %s354
      %p358 = pneg %p352
      %p359 = scmp.eq.s32.totalorder %s36, 1
      %p360 = por %p358, %p359
      %p361 = scmp.ne.s32.totalorder %s353, %s356
      %p362 = scmp.eq.s32.totalorder %s36, 0
      %p363 = por %p361, %p362
      %p364 = scmp.ne.s32.totalorder %s353, %s356
      %p365 = scmp.eq.s32.totalorder %s41, 1
      %p366 = por %p364, %p365
      %p367 = scmp.ne.s32.totalorder %s356, %s357
      %p368 = scmp.eq.s32.totalorder %s41, 0
      %p369 = por %p367, %p368
      %p370 = scmp.ne.s32.totalorder %s356, %s357
      %p371 = scmp.eq.s32.totalorder %s42, 1
      %p372 = por %p370, %p371
      %p374 = scmp.ne.s32.totalorder %s357, %s373
      %p375 = scmp.eq.s32.totalorder %s42, 0
      %p376 = por %p374, %p375
      %s377 = ssub.s32 %s36, %s43
      %p378 = scmp.eq.s32.totalorder %s377, 0
      %s380 = sadd.s32 %s379, 1
      %s381 = scalar_select %p378, %s379, %s380
      %p384 = pneg %p378
      %p385 = scmp.eq.s32.totalorder %s36, 1
      %p386 = por %p384, %p385
      %p387 = scmp.ne.s32.totalorder %s379, %s382
      %p388 = scmp.eq.s32.totalorder %s36, 0
      %p389 = por %p387, %p388
      %p390 = scmp.ne.s32.totalorder %s379, %s382
      %p391 = scmp.eq.s32.totalorder %s41, 1
      %p392 = por %p390, %p391
      %p393 = scmp.ne.s32.totalorder %s382, %s383
      %p394 = scmp.eq.s32.totalorder %s41, 0
      %p395 = por %p393, %p394
      %p396 = scmp.ne.s32.totalorder %s382, %s383
      %p397 = scmp.eq.s32.totalorder %s42, 1
      %p398 = por %p396, %p397
      %p400 = scmp.ne.s32.totalorder %s383, %s399
      %p401 = scmp.eq.s32.totalorder %s42, 0
      %p402 = por %p400, %p401
      %s403 = ssub.s32 %s36, %s43
      %p404 = scmp.eq.s32.totalorder %s403, 0
      %s406 = sadd.s32 %s405, 1
      %s407 = scalar_select %p404, %s405, %s406
      %p410 = pneg %p404
      %p411 = scmp.eq.s32.totalorder %s36, 1
      %p412 = por %p410, %p411
      %p413 = scmp.ne.s32.totalorder %s405, %s408
      %p414 = scmp.eq.s32.totalorder %s36, 0
      %p415 = por %p413, %p414
      %p416 = scmp.ne.s32.totalorder %s405, %s408
      %p417 = scmp.eq.s32.totalorder %s41, 1
      %p418 = por %p416, %p417
      %p419 = scmp.ne.s32.totalorder %s408, %s409
      %p420 = scmp.eq.s32.totalorder %s41, 0
      %p421 = por %p419, %p420
      %p422 = scmp.ne.s32.totalorder %s408, %s409
      %p423 = scmp.eq.s32.totalorder %s42, 1
      %p424 = por %p422, %p423
      %p426 = scmp.ne.s32.totalorder %s409, %s425
      %p427 = scmp.eq.s32.totalorder %s42, 0
      %p428 = por %p426, %p427
      %s429 = ssub.s32 %s36, %s43
      %p430 = scmp.eq.s32.totalorder %s429, 0
      %s432 = sadd.s32 %s431, 1
      %s433 = scalar_select %p430, %s431, %s432
      %p436 = pneg %p430
      %p437 = scmp.eq.s32.totalorder %s36, 1
      %p438 = por %p436, %p437
      %p439 = scmp.ne.s32.totalorder %s431, %s434
      %p440 = scmp.eq.s32.totalorder %s36, 0
      %p441 = por %p439, %p440
      %p442 = scmp.ne.s32.totalorder %s431, %s434
      %p443 = scmp.eq.s32.totalorder %s41, 1
      %p444 = por %p442, %p443
      %p445 = scmp.ne.s32.totalorder %s434, %s435
      %p446 = scmp.eq.s32.totalorder %s41, 0
      %p447 = por %p445, %p446
      %p448 = scmp.ne.s32.totalorder %s434, %s435
      %p449 = scmp.eq.s32.totalorder %s42, 1
      %p450 = por %p448, %p449
      %p452 = scmp.ne.s32.totalorder %s435, %s451
      %p453 = scmp.eq.s32.totalorder %s42, 0
      %p454 = por %p452, %p453
      %s455 = ssub.s32 %s36, %s43
      %p456 = scmp.eq.s32.totalorder %s455, 0
      %s458 = sadd.s32 %s457, 1
      %s459 = scalar_select %p456, %s457, %s458
      %p462 = pneg %p456
      %p463 = scmp.eq.s32.totalorder %s36, 1
      %p464 = por %p462, %p463
      %p465 = scmp.ne.s32.totalorder %s457, %s460
      %p466 = scmp.eq.s32.totalorder %s36, 0
      %p467 = por %p465, %p466
      %p468 = scmp.ne.s32.totalorder %s457, %s460
      %p469 = scmp.eq.s32.totalorder %s41, 1
      %p470 = por %p468, %p469
      %p471 = scmp.ne.s32.totalorder %s460, %s461
      %p472 = scmp.eq.s32.totalorder %s41, 0
      %p473 = por %p471, %p472
      %p474 = scmp.ne.s32.totalorder %s460, %s461
      %p475 = scmp.eq.s32.totalorder %s42, 1
      %p476 = por %p474, %p475
      %p478 = scmp.ne.s32.totalorder %s461, %s477
      %p479 = scmp.eq.s32.totalorder %s42, 0
      %p480 = por %p478, %p479
      %s482 = sadd.s32 %s481, 1
      %p485 = scmp.eq.s32.totalorder %s36, 1
      %p486 = scmp.ne.s32.totalorder %s481, %s483
      %p487 = scmp.eq.s32.totalorder %s36, 0
      %p488 = por %p486, %p487
      %p489 = scmp.ne.s32.totalorder %s481, %s483
      %p490 = scmp.eq.s32.totalorder %s41, 1
      %p491 = por %p489, %p490
      %p492 = scmp.ne.s32.totalorder %s483, %s484
      %p493 = scmp.eq.s32.totalorder %s41, 0
      %p494 = por %p492, %p493
      %p495 = scmp.ne.s32.totalorder %s483, %s484
      %p496 = scmp.eq.s32.totalorder %s42, 1
      %p497 = por %p495, %p496
      %p499 = scmp.ne.s32.totalorder %s484, %s498
      %p500 = scmp.eq.s32.totalorder %s42, 0
      %p501 = por %p499, %p500
      %s503 = sadd.s32 %s502, 1
      %p506 = scmp.eq.s32.totalorder %s36, 1
      %p507 = scmp.ne.s32.totalorder %s502, %s504
      %p508 = scmp.eq.s32.totalorder %s36, 0
      %p509 = por %p507, %p508
      %p510 = scmp.ne.s32.totalorder %s502, %s504
      %p511 = scmp.eq.s32.totalorder %s41, 1
      %p512 = por %p510, %p511
      %p513 = scmp.ne.s32.totalorder %s504, %s505
      %p514 = scmp.eq.s32.totalorder %s41, 0
      %p515 = por %p513, %p514
      %p516 = scmp.ne.s32.totalorder %s504, %s505
      %p517 = scmp.eq.s32.totalorder %s42, 1
      %p518 = por %p516, %p517
      %p520 = scmp.ne.s32.totalorder %s505, %s519
      %p521 = scmp.eq.s32.totalorder %s42, 0
      %p522 = por %p520, %p521
      %s524 = sadd.s32 %s523, 1
      %p527 = scmp.eq.s32.totalorder %s36, 1
      %p528 = scmp.ne.s32.totalorder %s523, %s525
      %p529 = scmp.eq.s32.totalorder %s36, 0
      %p530 = por %p528, %p529
      %p531 = scmp.ne.s32.totalorder %s523, %s525
      %p532 = scmp.eq.s32.totalorder %s41, 1
      %p533 = por %p531, %p532
      %p534 = scmp.ne.s32.totalorder %s525, %s526
      %p535 = scmp.eq.s32.totalorder %s41, 0
      %p536 = por %p534, %p535
      %p537 = scmp.ne.s32.totalorder %s525, %s526
      %p538 = scmp.eq.s32.totalorder %s42, 1
      %p539 = por %p537, %p538
      %p541 = scmp.ne.s32.totalorder %s526, %s540
      %p542 = scmp.eq.s32.totalorder %s42, 0
      %p543 = por %p541, %p542
      %p544 = scmp.le.s32.totalorder 1, %s36
      %p545 = scmp.lt.s32.totalorder %s36, 3
      %p546 = pnand %p544, %p545
      %p547 = pneg %p546
      // Predicated region
      $region9: #{tpu_custom_call.1} parent=5 // pred_check
        _
      $region10: #{tpu_custom_call.1} parent=5 // pred_check_branch
        %549 = sbr.rel (%p546) target = $region12
      $region11: #{tpu_custom_call.1} parent=5 // pred_region
        %s550 = ssub.s32 %s36, 1
        // Predicated region
        $region13: #{tpu_custom_call.1} parent=11 // pred_check
          %p551 = pneg %p57
        $region14: #{tpu_custom_call.1} parent=11 // pred_check_branch
          %553 = sbr.rel (%p551) target = $region16
        $region15: #{tpu_custom_call.1} parent=11 // pred_region
          %555 = vsyncadd [#allocation4], 0
          %s556 = sshll.u32 %s0, 4
          %s557 = int_to_ptr.hbm [resolvable:$true] %s556
          %s558 = sshll.u32 [#allocation3], 4
          %s559 = int_to_ptr.vmem [resolvable:$true] %s558
          %564 = dma.hbm_to_vmem [thread:$0]  %s557, 256, %s559, [#allocation4], 128, 128, 8
        $region16: #{tpu_custom_call.1} parent=11 // pred_fallthru
          _
        // Predicated region
        $region17: #{tpu_custom_call.1} parent=11 // pred_check
          %p565 = pneg %p494
        $region18: #{tpu_custom_call.1} parent=11 // pred_check_branch
          %567 = sbr.rel (%p565) target = $region20
        $region19: #{tpu_custom_call.1} parent=11 // pred_region
          _
        $region20: #{tpu_custom_call.1} parent=11 // pred_fallthru
          _
        // Predicated region
        $region21: #{tpu_custom_call.1} parent=11 // pred_check
          %p568 = pneg %p515
        $region22: #{tpu_custom_call.1} parent=11 // pred_check_branch
          %570 = sbr.rel (%p568) target = $region24
        $region23: #{tpu_custom_call.1} parent=11 // pred_region
          _
        $region24: #{tpu_custom_call.1} parent=11 // pred_fallthru
          _
      $region12: #{tpu_custom_call.1} parent=5 // pred_fallthru
        _
      %p571 = scmp.lt.s32.totalorder %s36, 2
      // Predicated region
      $region25: #{tpu_custom_call.1} parent=5 // pred_check
        %p572 = pneg %p571
      $region26: #{tpu_custom_call.1} parent=5 // pred_check_branch
        %574 = sbr.rel (%p572) target = $region28
      $region27: #{tpu_custom_call.1} parent=5 // pred_region
        // Predicated region
        $region29: #{tpu_custom_call.1} parent=27 // pred_check
          %p575 = pneg %p77
        $region30: #{tpu_custom_call.1} parent=27 // pred_check_branch
          %577 = sbr.rel (%p575) target = $region32
        $region31: #{tpu_custom_call.1} parent=27 // pred_region
          %s578 = sand.u32 %s36, 1
          %s579 = scalar_lea.sflag [#allocation7], %s578
          %s580 = sand.u32 %s67, 1
          %s581 = scalar_lea.vmem [#allocation6], %s580
          %583 = vsyncadd %s579, 0
          %s584 = scalar_lea.hbm %s1, %s36
          %s586 = sshll.u32 %s584, 4
          %s587 = int_to_ptr.hbm [resolvable:$true] %s586
          %s588 = sshll.u32 %s581, 4
          %s589 = int_to_ptr.vmem [resolvable:$true] %s588
          %591 = dma.hbm_to_vmem [thread:$0]  %s587, 16, %s589, %s579
        $region32: #{tpu_custom_call.1} parent=27 // pred_fallthru
          _
        // Predicated region
        $region33: #{tpu_custom_call.1} parent=27 // pred_check
          %p592 = pneg %p103
        $region34: #{tpu_custom_call.1} parent=27 // pred_check_branch
          %594 = sbr.rel (%p592) target = $region36
        $region35: #{tpu_custom_call.1} parent=27 // pred_region
          %s595 = sand.u32 %s36, 1
          %s596 = scalar_lea.sflag [#allocation7], %s595
          %s597 = sand.u32 %s93, 1
          %s598 = scalar_lea.vmem [#allocation8], %s597
          %600 = vsyncadd %s596, 0
          %s601 = scalar_lea.hbm %s2, %s36
          %s603 = sshll.u32 %s601, 4
          %s604 = int_to_ptr.hbm [resolvable:$true] %s603
          %s605 = sshll.u32 %s598, 4
          %s606 = int_to_ptr.vmem [resolvable:$true] %s605
          %608 = dma.hbm_to_vmem [thread:$0]  %s604, 16, %s606, %s596
        $region36: #{tpu_custom_call.1} parent=27 // pred_fallthru
          _
        // Predicated region
        $region37: #{tpu_custom_call.1} parent=27 // pred_check
          %p609 = pneg %p129
        $region38: #{tpu_custom_call.1} parent=27 // pred_check_branch
          %611 = sbr.rel (%p609) target = $region40
        $region39: #{tpu_custom_call.1} parent=27 // pred_region
          %p612 = scmp.lt.s32.totalorder %s36, 1
          %s613 = scalar_select %p612, %s36, 1
          %s614 = smul.addr %s613, 8
          %s615 = smul.addr %s614, 4
          %s616 = scalar_lea.vmem %s3, %s615
        $region40: #{tpu_custom_call.1} parent=27 // pred_fallthru
          _
        // Predicated region
        $region41: #{tpu_custom_call.1} parent=27 // pred_check
          %p617 = pneg %p155
        $region42: #{tpu_custom_call.1} parent=27 // pred_check_branch
          %619 = sbr.rel (%p617) target = $region44
        $region43: #{tpu_custom_call.1} parent=27 // pred_region
          %s620 = sand.u32 %s36, 1
          %s621 = scalar_lea.sflag [#allocation10], %s620
          %s622 = sand.u32 %s145, 1
          %s623 = scalar_lea.vmem [#allocation9], %s622
          %625 = vsyncadd %s621, 0
          %s626 = scalar_lea.hbm %s4, %s36
          %s628 = sshll.u32 %s626, 4
          %s629 = int_to_ptr.hbm [resolvable:$true] %s628
          %s630 = sshll.u32 %s623, 4
          %s631 = int_to_ptr.vmem [resolvable:$true] %s630
          %633 = dma.hbm_to_vmem [thread:$0]  %s629, 16, %s631, %s621
        $region44: #{tpu_custom_call.1} parent=27 // pred_fallthru
          _
        // Predicated region
        $region45: #{tpu_custom_call.1} parent=27 // pred_check
          %p634 = pneg %p181
        $region46: #{tpu_custom_call.1} parent=27 // pred_check_branch
          %636 = sbr.rel (%p634) target = $region48
        $region47: #{tpu_custom_call.1} parent=27 // pred_region
          %p637 = scmp.lt.s32.totalorder %s36, 1
          %s638 = scalar_select %p637, %s36, 1
          %s639 = smul.addr %s638, 8
          %s640 = smul.addr %s639, 4
          %s641 = scalar_lea.vmem %s5, %s640
        $region48: #{tpu_custom_call.1} parent=27 // pred_fallthru
          _
        // Predicated region
        $region49: #{tpu_custom_call.1} parent=27 // pred_check
          %p642 = pneg %p207
        $region50: #{tpu_custom_call.1} parent=27 // pred_check_branch
          %644 = sbr.rel (%p642) target = $region52
        $region51: #{tpu_custom_call.1} parent=27 // pred_region
          %s645 = sand.u32 %s36, 1
          %s646 = scalar_lea.sflag [#allocation10], %s645
          %s647 = sand.u32 %s197, 1
          %s648 = scalar_lea.vmem [#allocation11], %s647
          %650 = vsyncadd %s646, 0
          %s651 = scalar_lea.hbm %s6, %s36
          %s653 = sshll.u32 %s651, 4
          %s654 = int_to_ptr.hbm [resolvable:$true] %s653
          %s655 = sshll.u32 %s648, 4
          %s656 = int_to_ptr.vmem [resolvable:$true] %s655
          %658 = dma.hbm_to_vmem [thread:$0]  %s654, 16, %s656, %s646
        $region52: #{tpu_custom_call.1} parent=27 // pred_fallthru
          _
        // Predicated region
        $region53: #{tpu_custom_call.1} parent=27 // pred_check
          %p659 = pneg %p233
        $region54: #{tpu_custom_call.1} parent=27 // pred_check_branch
          %661 = sbr.rel (%p659) target = $region56
        $region55: #{tpu_custom_call.1} parent=27 // pred_region
          %p662 = scmp.lt.s32.totalorder %s36, 1
          %s663 = scalar_select %p662, %s36, 1
          %s664 = smul.addr %s663, 8
          %s665 = smul.addr %s664, 4
          %s666 = scalar_lea.vmem %s7, %s665
        $region56: #{tpu_custom_call.1} parent=27 // pred_fallthru
          _
        // Predicated region
        $region57: #{tpu_custom_call.1} parent=27 // pred_check
          %p667 = pneg %p259
        $region58: #{tpu_custom_call.1} parent=27 // pred_check_branch
          %669 = sbr.rel (%p667) target = $region60
        $region59: #{tpu_custom_call.1} parent=27 // pred_region
          %s670 = sand.u32 %s36, 1
          %s671 = scalar_lea.sflag [#allocation13], %s670
          %s672 = sand.u32 %s249, 1
          %s673 = scalar_lea.vmem [#allocation12], %s672
          %675 = vsyncadd %s671, 0
          %s676 = scalar_lea.hbm %s8, %s36
          %s678 = sshll.u32 %s676, 4
          %s679 = int_to_ptr.hbm [resolvable:$true] %s678
          %s680 = sshll.u32 %s673, 4
          %s681 = int_to_ptr.vmem [resolvable:$true] %s680
          %683 = dma.hbm_to_vmem [thread:$0]  %s679, 16, %s681, %s671
        $region60: #{tpu_custom_call.1} parent=27 // pred_fallthru
          _
        // Predicated region
        $region61: #{tpu_custom_call.1} parent=27 // pred_check
          %p684 = pneg %p285
        $region62: #{tpu_custom_call.1} parent=27 // pred_check_branch
          %686 = sbr.rel (%p684) target = $region64
        $region63: #{tpu_custom_call.1} parent=27 // pred_region
          %p687 = scmp.lt.s32.totalorder %s36, 1
          %s688 = scalar_select %p687, %s36, 1
          %s689 = smul.addr %s688, 8
          %s690 = smul.addr %s689, 4
          %s691 = scalar_lea.vmem %s9, %s690
        $region64: #{tpu_custom_call.1} parent=27 // pred_fallthru
          _
        // Predicated region
        $region65: #{tpu_custom_call.1} parent=27 // pred_check
          %p692 = pneg %p311
        $region66: #{tpu_custom_call.1} parent=27 // pred_check_branch
          %694 = sbr.rel (%p692) target = $region68
        $region67: #{tpu_custom_call.1} parent=27 // pred_region
          %p695 = scmp.lt.s32.totalorder %s36, 1
          %s696 = scalar_select %p695, %s36, 1
          %s697 = scalar_lea.vmem %s10, %s696
        $region68: #{tpu_custom_call.1} parent=27 // pred_fallthru
          _
        // Predicated region
        $region69: #{tpu_custom_call.1} parent=27 // pred_check
          %p698 = pneg %p337
        $region70: #{tpu_custom_call.1} parent=27 // pred_check_branch
          %700 = sbr.rel (%p698) target = $region72
        $region71: #{tpu_custom_call.1} parent=27 // pred_region
          %p701 = scmp.lt.s32.totalorder %s36, 1
          %s702 = scalar_select %p701, %s36, 1
          %s703 = scalar_lea.vmem %s11, %s702
        $region72: #{tpu_custom_call.1} parent=27 // pred_fallthru
          _
        // Predicated region
        $region73: #{tpu_custom_call.1} parent=27 // pred_check
          %p704 = pneg %p363
        $region74: #{tpu_custom_call.1} parent=27 // pred_check_branch
          %706 = sbr.rel (%p704) target = $region76
        $region75: #{tpu_custom_call.1} parent=27 // pred_region
          %s707 = sand.u32 %s36, 1
          %s708 = scalar_lea.sflag [#allocation13], %s707
          %s709 = sand.u32 %s353, 1
          %s710 = scalar_lea.vmem [#allocation14], %s709
          %712 = vsyncadd %s708, 0
          %s713 = scalar_lea.hbm %s12, %s36
          %s715 = sshll.u32 %s713, 4
          %s716 = int_to_ptr.hbm [resolvable:$true] %s715
          %s717 = sshll.u32 %s710, 4
          %s718 = int_to_ptr.vmem [resolvable:$true] %s717
          %720 = dma.hbm_to_vmem [thread:$0]  %s716, 16, %s718, %s708
        $region76: #{tpu_custom_call.1} parent=27 // pred_fallthru
          _
        // Predicated region
        $region77: #{tpu_custom_call.1} parent=27 // pred_check
          %p721 = pneg %p389
        $region78: #{tpu_custom_call.1} parent=27 // pred_check_branch
          %723 = sbr.rel (%p721) target = $region80
        $region79: #{tpu_custom_call.1} parent=27 // pred_region
          %p724 = scmp.lt.s32.totalorder %s36, 1
          %s725 = scalar_select %p724, %s36, 1
          %s726 = smul.addr %s725, 16
          %s727 = smul.addr %s726, 4
          %s728 = scalar_lea.vmem %s13, %s727
        $region80: #{tpu_custom_call.1} parent=27 // pred_fallthru
          _
        // Predicated region
        $region81: #{tpu_custom_call.1} parent=27 // pred_check
          %p729 = pneg %p415
        $region82: #{tpu_custom_call.1} parent=27 // pred_check_branch
          %731 = sbr.rel (%p729) target = $region84
        $region83: #{tpu_custom_call.1} parent=27 // pred_region
          %p732 = scmp.lt.s32.totalorder %s36, 1
          %s733 = scalar_select %p732, %s36, 1
          %s734 = smul.addr %s733, 2
          %s735 = scalar_lea.vmem %s14, %s734
        $region84: #{tpu_custom_call.1} parent=27 // pred_fallthru
          _
        // Predicated region
        $region85: #{tpu_custom_call.1} parent=27 // pred_check
          %p736 = pneg %p441
        $region86: #{tpu_custom_call.1} parent=27 // pred_check_branch
          %738 = sbr.rel (%p736) target = $region88
        $region87: #{tpu_custom_call.1} parent=27 // pred_region
          %p739 = scmp.lt.s32.totalorder %s36, 1
          %s740 = scalar_select %p739, %s36, 1
          %s741 = smul.addr %s740, 32
          %s742 = smul.addr %s741, 4
          %s743 = scalar_lea.vmem %s15, %s742
        $region88: #{tpu_custom_call.1} parent=27 // pred_fallthru
          _
        // Predicated region
        $region89: #{tpu_custom_call.1} parent=27 // pred_check
          %p744 = pneg %p467
        $region90: #{tpu_custom_call.1} parent=27 // pred_check_branch
          %746 = sbr.rel (%p744) target = $region92
        $region91: #{tpu_custom_call.1} parent=27 // pred_region
          %p747 = scmp.lt.s32.totalorder %s36, 1
          %s748 = scalar_select %p747, %s36, 1
          %s749 = scalar_lea.vmem %s16, %s748
        $region92: #{tpu_custom_call.1} parent=27 // pred_fallthru
          _
      $region28: #{tpu_custom_call.1} parent=5 // pred_fallthru
        _
      %p750 = scmp.le.s32.totalorder 1, %s36
      %p751 = scmp.lt.s32.totalorder %s36, 3
      %p752 = pnand %p750, %p751
      %p753 = pneg %p752
      // Predicated region
      $region93: #{tpu_custom_call.1} parent=5 // pred_check
        _
      $region94: #{tpu_custom_call.1} parent=5 // pred_check_branch
        %755 = sbr.rel (%p752) target = $region96
      $region95: #{tpu_custom_call.1} parent=5 // pred_region
        %s756 = ssub.s32 %s36, 1
        // Predicated region
        $region97: #{tpu_custom_call.1} parent=95 // pred_check
          %p757 = pneg %p57
        $region98: #{tpu_custom_call.1} parent=95 // pred_check_branch
          %759 = sbr.rel (%p757) target = $region100
        $region99: #{tpu_custom_call.1} parent=95 // pred_region
          %761 = dma.done [#allocation4], 256
        $region100: #{tpu_custom_call.1} parent=95 // pred_fallthru
          _
        %s762 = sand.u32 %s41, 1
        %s763 = scalar_lea.sflag [#allocation7], %s762
        %s764 = sand.u32 %s70, 1
        %s765 = scalar_lea.vmem [#allocation6], %s764
        // Predicated region
        $region101: #{tpu_custom_call.1} parent=95 // pred_check
          %p766 = pneg %p83
        $region102: #{tpu_custom_call.1} parent=95 // pred_check_branch
          %768 = sbr.rel (%p766) target = $region104
        $region103: #{tpu_custom_call.1} parent=95 // pred_region
          %770 = dma.done %s763, 16
        $region104: #{tpu_custom_call.1} parent=95 // pred_fallthru
          _
        %s771 = sand.u32 %s41, 1
        %s772 = scalar_lea.sflag [#allocation7], %s771
        %s773 = sand.u32 %s96, 1
        %s774 = scalar_lea.vmem [#allocation8], %s773
        // Predicated region
        $region105: #{tpu_custom_call.1} parent=95 // pred_check
          %p775 = pneg %p109
        $region106: #{tpu_custom_call.1} parent=95 // pred_check_branch
          %777 = sbr.rel (%p775) target = $region108
        $region107: #{tpu_custom_call.1} parent=95 // pred_region
          %779 = dma.done %s772, 16
        $region108: #{tpu_custom_call.1} parent=95 // pred_fallthru
          _
        %s780 = sand.u32 %s41, 1
        %s781 = scalar_lea.sflag [#allocation10], %s780
        %s782 = sand.u32 %s148, 1
        %s783 = scalar_lea.vmem [#allocation9], %s782
        // Predicated region
        $region109: #{tpu_custom_call.1} parent=95 // pred_check
          %p784 = pneg %p161
        $region110: #{tpu_custom_call.1} parent=95 // pred_check_branch
          %786 = sbr.rel (%p784) target = $region112
        $region111: #{tpu_custom_call.1} parent=95 // pred_region
          %788 = dma.done %s781, 16
        $region112: #{tpu_custom_call.1} parent=95 // pred_fallthru
          _
        %s789 = sand.u32 %s41, 1
        %s790 = scalar_lea.sflag [#allocation10], %s789
        %s791 = sand.u32 %s200, 1
        %s792 = scalar_lea.vmem [#allocation11], %s791
        // Predicated region
        $region113: #{tpu_custom_call.1} parent=95 // pred_check
          %p793 = pneg %p213
        $region114: #{tpu_custom_call.1} parent=95 // pred_check_branch
          %795 = sbr.rel (%p793) target = $region116
        $region115: #{tpu_custom_call.1} parent=95 // pred_region
          %797 = dma.done %s790, 16
        $region116: #{tpu_custom_call.1} parent=95 // pred_fallthru
          _
        %s798 = sand.u32 %s41, 1
        %s799 = scalar_lea.sflag [#allocation13], %s798
        %s800 = sand.u32 %s252, 1
        %s801 = scalar_lea.vmem [#allocation12], %s800
        // Predicated region
        $region117: #{tpu_custom_call.1} parent=95 // pred_check
          %p802 = pneg %p265
        $region118: #{tpu_custom_call.1} parent=95 // pred_check_branch
          %804 = sbr.rel (%p802) target = $region120
        $region119: #{tpu_custom_call.1} parent=95 // pred_region
          %806 = dma.done %s799, 16
        $region120: #{tpu_custom_call.1} parent=95 // pred_fallthru
          _
        %s807 = sand.u32 %s41, 1
        %s808 = scalar_lea.sflag [#allocation13], %s807
        %s809 = sand.u32 %s356, 1
        %s810 = scalar_lea.vmem [#allocation14], %s809
        // Predicated region
        $region121: #{tpu_custom_call.1} parent=95 // pred_check
          %p811 = pneg %p369
        $region122: #{tpu_custom_call.1} parent=95 // pred_check_branch
          %813 = sbr.rel (%p811) target = $region124
        $region123: #{tpu_custom_call.1} parent=95 // pred_region
          %815 = dma.done %s808, 16
        $region124: #{tpu_custom_call.1} parent=95 // pred_fallthru
          _
        %p816 = pneg %p57
        %p817 = pneg %p54
        %s818 = sand.u32 %s41, 1
        %s819 = scalar_lea.sflag [#allocation7], %s818
        %s820 = sand.u32 %s70, 1
        %s821 = scalar_lea.vmem [#allocation6], %s820
        %p822 = pneg %p83
        %p823 = pneg %p80
        %s824 = sand.u32 %s41, 1
        %s825 = scalar_lea.sflag [#allocation7], %s824
        %s826 = sand.u32 %s96, 1
        %s827 = scalar_lea.vmem [#allocation8], %s826
        %p828 = pneg %p109
        %p829 = pneg %p106
        %p830 = scmp.lt.s32.totalorder %s41, 1
        %s831 = scalar_select %p830, %s41, 1
        %s832 = smul.addr %s831, 8
        %s833 = smul.addr %s832, 4
        %s834 = scalar_lea.vmem %s3, %s833
        %p835 = pneg %p135
        %p836 = pneg %p132
        %s837 = sand.u32 %s41, 1
        %s838 = scalar_lea.sflag [#allocation10], %s837
        %s839 = sand.u32 %s148, 1
        %s840 = scalar_lea.vmem [#allocation9], %s839
        %p841 = pneg %p161
        %p842 = pneg %p158
        %p843 = scmp.lt.s32.totalorder %s41, 1
        %s844 = scalar_select %p843, %s41, 1
        %s845 = smul.addr %s844, 8
        %s846 = smul.addr %s845, 4
        %s847 = scalar_lea.vmem %s5, %s846
        %p848 = pneg %p187
        %p849 = pneg %p184
        %s850 = sand.u32 %s41, 1
        %s851 = scalar_lea.sflag [#allocation10], %s850
        %s852 = sand.u32 %s200, 1
        %s853 = scalar_lea.vmem [#allocation11], %s852
        %p854 = pneg %p213
        %p855 = pneg %p210
        %p856 = scmp.lt.s32.totalorder %s41, 1
        %s857 = scalar_select %p856, %s41, 1
        %s858 = smul.addr %s857, 8
        %s859 = smul.addr %s858, 4
        %s860 = scalar_lea.vmem %s7, %s859
        %p861 = pneg %p239
        %p862 = pneg %p236
        %s863 = sand.u32 %s41, 1
        %s864 = scalar_lea.sflag [#allocation13], %s863
        %s865 = sand.u32 %s252, 1
        %s866 = scalar_lea.vmem [#allocation12], %s865
        %p867 = pneg %p265
        %p868 = pneg %p262
        %p869 = scmp.lt.s32.totalorder %s41, 1
        %s870 = scalar_select %p869, %s41, 1
        %s871 = smul.addr %s870, 8
        %s872 = smul.addr %s871, 4
        %s873 = scalar_lea.vmem %s9, %s872
        %p874 = pneg %p291
        %p875 = pneg %p288
        %p876 = scmp.lt.s32.totalorder %s41, 1
        %s877 = scalar_select %p876, %s41, 1
        %s878 = scalar_lea.vmem %s10, %s877
        %p879 = pneg %p317
        %p880 = pneg %p314
        %p881 = scmp.lt.s32.totalorder %s41, 1
        %s882 = scalar_select %p881, %s41, 1
        %s883 = scalar_lea.vmem %s11, %s882
        %p884 = pneg %p343
        %p885 = pneg %p340
        %s886 = sand.u32 %s41, 1
        %s887 = scalar_lea.sflag [#allocation13], %s886
        %s888 = sand.u32 %s356, 1
        %s889 = scalar_lea.vmem [#allocation14], %s888
        %p890 = pneg %p369
        %p891 = pneg %p366
        %p892 = scmp.lt.s32.totalorder %s41, 1
        %s893 = scalar_select %p892, %s41, 1
        %s894 = smul.addr %s893, 16
        %s895 = smul.addr %s894, 4
        %s896 = scalar_lea.vmem %s13, %s895
        %p897 = pneg %p395
        %p898 = pneg %p392
        %p899 = scmp.lt.s32.totalorder %s41, 1
        %s900 = scalar_select %p899, %s41, 1
        %s901 = smul.addr %s900, 2
        %s902 = scalar_lea.vmem %s14, %s901
        %p903 = pneg %p421
        %p904 = pneg %p418
        %p905 = scmp.lt.s32.totalorder %s41, 1
        %s906 = scalar_select %p905, %s41, 1
        %s907 = smul.addr %s906, 32
        %s908 = smul.addr %s907, 4
        %s909 = scalar_lea.vmem %s15, %s908
        %p910 = pneg %p447
        %p911 = pneg %p444
        %p912 = scmp.lt.s32.totalorder %s41, 1
        %s913 = scalar_select %p912, %s41, 1
        %s914 = scalar_lea.vmem %s16, %s913
        %p915 = pneg %p473
        %p916 = pneg %p470
        %p917 = pneg %p494
        %p918 = pneg %p491
        %p919 = pneg %p515
        %p920 = pneg %p512
        %p921 = pneg %p536
        %p922 = pneg %p533
        %p923 = scmp.lt.s32.totalorder %s41, 1
        %s924 = scalar_select %p923, %s41, 1
        %s925 = smul.addr %s924, 8
        %s926 = smul.addr %s925, 4
        %s927 = scalar_lea.vmem %s3, %s926
        %p928 = scmp.lt.s32.totalorder %s41, 1
        %s929 = scalar_select %p928, %s41, 1
        %s930 = smul.addr %s929, 8
        %s931 = smul.addr %s930, 4
        %s932 = scalar_lea.vmem %s5, %s931
        %p933 = scmp.lt.s32.totalorder %s41, 1
        %s934 = scalar_select %p933, %s41, 1
        %s935 = smul.addr %s934, 8
        %s936 = smul.addr %s935, 4
        %s937 = scalar_lea.vmem %s7, %s936
        %p938 = scmp.lt.s32.totalorder %s41, 1
        %s939 = scalar_select %p938, %s41, 1
        %s940 = smul.addr %s939, 8
        %s941 = smul.addr %s940, 4
        %s942 = scalar_lea.vmem %s9, %s941
        %p943 = scmp.lt.s32.totalorder %s41, 1
        %s944 = scalar_select %p943, %s41, 1
        %s945 = scalar_lea.vmem %s10, %s944
        %p946 = scmp.lt.s32.totalorder %s41, 1
        %s947 = scalar_select %p946, %s41, 1
        %s948 = scalar_lea.vmem %s11, %s947
        %p949 = scmp.lt.s32.totalorder %s41, 1
        %s950 = scalar_select %p949, %s41, 1
        %s951 = smul.addr %s950, 16
        %s952 = smul.addr %s951, 4
        %s953 = scalar_lea.vmem %s13, %s952
        %p954 = scmp.lt.s32.totalorder %s41, 1
        %s955 = scalar_select %p954, %s41, 1
        %s956 = smul.addr %s955, 2
        %s957 = scalar_lea.vmem %s14, %s956
        %p958 = scmp.lt.s32.totalorder %s41, 1
        %s959 = scalar_select %p958, %s41, 1
        %s960 = smul.addr %s959, 32
        %s961 = smul.addr %s960, 4
        %s962 = scalar_lea.vmem %s15, %s961
        %p963 = scmp.lt.s32.totalorder %s41, 1
        %s964 = scalar_select %p963, %s41, 1
        %s965 = scalar_lea.vmem %s16, %s964
        %p967 = scmp.eq.s32.totalorder %s41, 0
        // Predicated region
        $region125: #{tpu_custom_call.1} parent=95 // pred_check
          %p968 = pneg %p967
        $region126: #{tpu_custom_call.1} parent=95 // pred_check_branch
          %970 = sbr.rel (%p968) target = $region128
        $region127: #{tpu_custom_call.1} parent=95 // pred_region
          %v971 = vld [vmem:[#allocation3] sm:$0xff]
          %v972 = vld [vmem:[#allocation3 + $0x8] sm:$0xff]
          %vm973 = vcmask 523264
          %974 = vst.msk [vmem:[#allocation2] sm:$0xff] %vm973, %v971
          %975 = vst.msk [vmem:[#allocation2 + $0x8] sm:$0xff] %vm973, %v972
        $region128: #{tpu_custom_call.1} parent=95 // pred_fallthru
          _
        %v976 = vld [vmem:[#allocation2] sm:$0xff]
        %v977 = vld [vmem:[#allocation2 + $0x8] sm:$0xff]
        %v978 = vld [vmem:[%s765] sm:$0x1]
        %v979 = vld [vmem:[%s774] sm:$0x1]
        %vm980 = vcmask 523264
        %v981 = vsel %vm980, %v976, 0.0
        %982 = vadd.xlane.f32.xlu0 %v981
        %v983 = vpop.xlane.xlu0 %982
        %v984 = vsel %vm980, %v977, 0.0
        %985 = vadd.xlane.f32.xlu0 %v984
        %v986 = vpop.xlane.xlu0 %985
        %v987 = vrcp.pop 64.0
        %v988 = vmul.f32 64.0, %v987
        %v989 = vsub.f32 1.0, %v988
        %v990 = vmul.f32 %v987, %v989
        %v991 = vadd.f32 %v987, %v990
        %vm992 = vweird.f32 %v987
        %v993 = vsel %vm992, %v987, %v991
        %v994 = vmul.f32 %v983, %v993
        %v995 = vmul.f32 %v986, %v993
        %v996 = vsub.f32 %v976, %v994
        %v997 = vsub.f32 %v977, %v995
        %v998 = vmul.f32 %v996, %v996
        %v999 = vmul.f32 %v997, %v997
        %v1000 = vsel %vm980, %v998, 0.0
        %1001 = vadd.xlane.f32.xlu0 %v1000
        %v1002 = vpop.xlane.xlu0 %1001
        %v1003 = vsel %vm980, %v999, 0.0
        %1004 = vadd.xlane.f32.xlu0 %v1003
        %v1005 = vpop.xlane.xlu0 %1004
        %v1006 = vmul.f32 %v1002, %v993
        %v1007 = vmul.f32 %v1005, %v993
        %v1008 = vadd.f32 %v1006, 1e-05
        %v1009 = vadd.f32 %v1007, 1e-05
        %v1010 = vrsqrt.pop %v1008
        %v1011 = vmul.f32 %v1010, %v1008
        %v1012 = vmul.f32 %v1011, %v1010
        %v1013 = vmul.f32 0.5, %v1012
        %v1014 = vsub.f32 1.5, %v1013
        %v1015 = vmul.f32 %v1010, %v1014
        %vm1016 = vweird.f32 %v1008
        %vm1017 = vweird.f32 %v1010
        %vm1018 = vmor %vm1016, %vm1017
        %v1019 = vsel %vm1018, %v1010, %v1015
        %v1020 = vrsqrt.pop %v1009
        %v1021 = vmul.f32 %v1020, %v1009
        %v1022 = vmul.f32 %v1021, %v1020
        %v1023 = vmul.f32 0.5, %v1022
        %v1024 = vsub.f32 1.5, %v1023
        %v1025 = vmul.f32 %v1020, %v1024
        %vm1026 = vweird.f32 %v1009
        %vm1027 = vweird.f32 %v1020
        %vm1028 = vmor %vm1026, %vm1027
        %v1029 = vsel %vm1028, %v1020, %v1025
        %v1030 = vmul.f32 %v996, %v1019
        %v1031 = vmul.f32 %v997, %v1029
        %v1033 = vperm.slane %v978, 0
        %v1035 = vmul.f32 %v1030, %v1033
        %v1036 = vmul.f32 %v1031, %v1033
        %v1038 = vperm.slane %v979, 0
        %v1040 = vadd.f32 %v1035, %v1038
        %v1041 = vadd.f32 %v1036, %v1038
        %v1042 = vpack.c.bf16 %v1041, %v1040
        %v1043 = vld [vmem:[%s927] sm:$0xf]
        %v1044 = vld [vmem:[%s927 + $0x4] sm:$0xf]
        %v1045 = vld [vmem:[%s927 + $0x8] sm:$0xf]
        %v1046 = vld [vmem:[%s927 + $0xc] sm:$0xf]
        %v1047 = vld [vmem:[%s927 + $0x10] sm:$0xf]
        %v1048 = vld [vmem:[%s927 + $0x14] sm:$0xf]
        %v1049 = vld [vmem:[%s927 + $0x18] sm:$0xf]
        %v1050 = vld [vmem:[%s927 + $0x1c] sm:$0xf]
        %v1051 = vld [vmem:[%s783] sm:$0x1]
        %v1053 = vperm.slane %v1051, 0
        %v1063 = vunpack.c.l.b16 %v1043
        %v1064 = vunpack.c.l.b16 %v1044
        %v1065 = vunpack.c.l.b16 %v1045
        %v1066 = vunpack.c.l.b16 %v1046
        %v1067 = vunpack.c.l.b16 %v1047
        %v1068 = vunpack.c.l.b16 %v1048
        %v1069 = vunpack.c.l.b16 %v1049
        %v1070 = vunpack.c.l.b16 %v1050
        %v1071 = vpack.c.b16 %v1064, %v1063
        %v1072 = vpack.c.b16 %v1066, %v1065
        %v1073 = vpack.c.b16 %v1068, %v1067
        %v1074 = vpack.c.b16 %v1070, %v1069
        %v1080 = vsel %vm980, %v1042, 0
        %1082 = vmatpush.bf16.msra.mxu0 0
        %1083 = vmatpush.bf16.msra.mxu0 0
        %1084 = vmatpush.bf16.msra.mxu0 0
        %1085 = vmatpush.bf16.msra.mxu0 0
        %1086 = vmatpush.bf16.msra.mxu0 %v1074
        %1087 = vmatpush.bf16.msra.mxu0 %v1073
        %1088 = vmatpush.bf16.msra.mxu0 %v1072
        %1089 = vmatpush.bf16.msra.mxu0 %v1071
        %1090 = vmatmul.bf16.gmra.mxu0 %v1080
        %v1091 = vpop.f32.mrf.mxu0
        %v1092 = vadd.f32 %v1053, %v1091
        %v1093 = vpop.f32.mrf.mxu0
        %v1094 = vadd.f32 %v1053, %v1093
        %1095 = vdwg.mxu0
        %v1096 = vld [vmem:[%s932] sm:$0xf]
        %v1097 = vld [vmem:[%s932 + $0x4] sm:$0xf]
        %v1098 = vld [vmem:[%s932 + $0x8] sm:$0xf]
        %v1099 = vld [vmem:[%s932 + $0xc] sm:$0xf]
        %v1100 = vld [vmem:[%s932 + $0x10] sm:$0xf]
        %v1101 = vld [vmem:[%s932 + $0x14] sm:$0xf]
        %v1102 = vld [vmem:[%s932 + $0x18] sm:$0xf]
        %v1103 = vld [vmem:[%s932 + $0x1c] sm:$0xf]
        %v1104 = vld [vmem:[%s792] sm:$0x1]
        %v1106 = vperm.slane %v1104, 0
        %v1116 = vunpack.c.l.b16 %v1096
        %v1117 = vunpack.c.l.b16 %v1097
        %v1118 = vunpack.c.l.b16 %v1098
        %v1119 = vunpack.c.l.b16 %v1099
        %v1120 = vunpack.c.l.b16 %v1100
        %v1121 = vunpack.c.l.b16 %v1101
        %v1122 = vunpack.c.l.b16 %v1102
        %v1123 = vunpack.c.l.b16 %v1103
        %v1124 = vpack.c.b16 %v1117, %v1116
        %v1125 = vpack.c.b16 %v1119, %v1118
        %v1126 = vpack.c.b16 %v1121, %v1120
        %v1127 = vpack.c.b16 %v1123, %v1122
        %1132 = vmatpush.bf16.msra.mxu0 0
        %1133 = vmatpush.bf16.msra.mxu0 0
        %1134 = vmatpush.bf16.msra.mxu0 0
        %1135 = vmatpush.bf16.msra.mxu0 0
        %1136 = vmatpush.bf16.msra.mxu0 %v1127
        %1137 = vmatpush.bf16.msra.mxu0 %v1126
        %1138 = vmatpush.bf16.msra.mxu0 %v1125
        %1139 = vmatpush.bf16.msra.mxu0 %v1124
        %1140 = vmatmul.bf16.gmra.mxu0 %v1080
        %v1141 = vpop.f32.mrf.mxu0
        %v1142 = vadd.f32 %v1106, %v1141
        %v1143 = vpop.f32.mrf.mxu0
        %v1144 = vadd.f32 %v1106, %v1143
        %1145 = vdwg.mxu0
        %v1146 = vld [vmem:[%s937] sm:$0xf]
        %v1147 = vld [vmem:[%s937 + $0x4] sm:$0xf]
        %v1148 = vld [vmem:[%s937 + $0x8] sm:$0xf]
        %v1149 = vld [vmem:[%s937 + $0xc] sm:$0xf]
        %v1150 = vld [vmem:[%s937 + $0x10] sm:$0xf]
        %v1151 = vld [vmem:[%s937 + $0x14] sm:$0xf]
        %v1152 = vld [vmem:[%s937 + $0x18] sm:$0xf]
        %v1153 = vld [vmem:[%s937 + $0x1c] sm:$0xf]
        %v1154 = vld [vmem:[%s801] sm:$0x1]
        %v1156 = vperm.slane %v1154, 0
        %v1166 = vunpack.c.l.b16 %v1146
        %v1167 = vunpack.c.l.b16 %v1147
        %v1168 = vunpack.c.l.b16 %v1148
        %v1169 = vunpack.c.l.b16 %v1149
        %v1170 = vunpack.c.l.b16 %v1150
        %v1171 = vunpack.c.l.b16 %v1151
        %v1172 = vunpack.c.l.b16 %v1152
        %v1173 = vunpack.c.l.b16 %v1153
        %v1174 = vpack.c.b16 %v1167, %v1166
        %v1175 = vpack.c.b16 %v1169, %v1168
        %v1176 = vpack.c.b16 %v1171, %v1170
        %v1177 = vpack.c.b16 %v1173, %v1172
        %1182 = vmatpush.bf16.msra.mxu0 0
        %1183 = vmatpush.bf16.msra.mxu0 0
        %1184 = vmatpush.bf16.msra.mxu0 0
        %1185 = vmatpush.bf16.msra.mxu0 0
        %1186 = vmatpush.bf16.msra.mxu0 %v1177
        %1187 = vmatpush.bf16.msra.mxu0 %v1176
        %1188 = vmatpush.bf16.msra.mxu0 %v1175
        %1189 = vmatpush.bf16.msra.mxu0 %v1174
        %1190 = vmatmul.bf16.gmra.mxu0 %v1080
        %v1191 = vpop.f32.mrf.mxu0
        %v1192 = vadd.f32 %v1156, %v1191
        %v1193 = vpop.f32.mrf.mxu0
        %v1194 = vadd.f32 %v1156, %v1193
        %1195 = vdwg.mxu0
        %v1196 = vpack.c.bf16 %v1092, %v1092
        %v1197 = vpack.c.bf16 %v1094, %v1094
        %v1198 = vpack.c.bf16 %v1142, %v1142
        %v1199 = vpack.c.bf16 %v1144, %v1144
        %v1200 = vpack.c.bf16 %v1192, %v1192
        %v1201 = vpack.c.bf16 %v1194, %v1194
        %vm1202 = vcmask 130048
        %v1204 = vsel %vm1202, %v1196, 0
        %v1207 = vsel %vm1202, %v1198, 0
        %1209 = vmatpush.bf16.xpose.msra.mxu0 0
        %1210 = vmatpush.bf16.xpose.msra.mxu0 0
        %1211 = vmatpush.bf16.xpose.msra.mxu0 0
        %1212 = vmatpush.bf16.xpose.msra.mxu0 0
        %1213 = vmatpush.bf16.xpose.msra.mxu0 0
        %1214 = vmatpush.bf16.xpose.msra.mxu0 0
        %1215 = vmatpush.bf16.xpose.msra.mxu0 0
        %1216 = vmatpush.bf16.xpose.msra.mxu0 %v1207
        %1217 = vmatmul.bf16.gmra.mxu0 %v1204
        %v1218 = vpop.f32.mrf.mxu0
        %v1219 = vadd.f32 0.0, %v1218
        %v1220 = vpop.f32.mrf.mxu0
        %1221 = vdwg.mxu0
        %v1223 = vsel %vm1202, %v1197, 0
        %v1226 = vsel %vm1202, %v1199, 0
        %1228 = vmatpush.bf16.xpose.msra.mxu0 0
        %1229 = vmatpush.bf16.xpose.msra.mxu0 0
        %1230 = vmatpush.bf16.xpose.msra.mxu0 0
        %1231 = vmatpush.bf16.xpose.msra.mxu0 0
        %1232 = vmatpush.bf16.xpose.msra.mxu0 0
        %1233 = vmatpush.bf16.xpose.msra.mxu0 0
        %1234 = vmatpush.bf16.xpose.msra.mxu0 0
        %1235 = vmatpush.bf16.xpose.msra.mxu0 %v1226
        %1236 = vmatmul.bf16.gmra.mxu0 %v1223
        %v1237 = vpop.f32.mrf.mxu0
        %v1238 = vadd.f32 0.0, %v1237
        %v1239 = vpop.f32.mrf.mxu0
        %1240 = vdwg.mxu0
        %vm1241 = vcmask 64512
        %v1242 = vsel %vm1241, %v1219, -inf
        %1243 = vmax.xlane.f32.xlu0 %v1242
        %v1244 = vpop.xlane.xlu0 %1243
        %v1245 = vsel %vm1241, %v1238, -inf
        %1246 = vmax.xlane.f32.xlu0 %v1245
        %v1247 = vpop.xlane.xlu0 %1246
        %v1248 = vsub.f32 %v1219, %v1244
        %v1249 = vsub.f32 %v1238, %v1247
        %v1250 = vmul.f32 %v1248, 1.442695
        %v1251 = vpow.pop %v1250
        %v1252 = vmul.f32 %v1249, 1.442695
        %v1253 = vpow.pop %v1252
        %v1254 = vsel %vm1241, %v1251, 0.0
        %1255 = vadd.xlane.f32.xlu0 %v1254
        %v1256 = vpop.xlane.xlu0 %1255
        %v1257 = vsel %vm1241, %v1253, 0.0
        %1258 = vadd.xlane.f32.xlu0 %v1257
        %v1259 = vpop.xlane.xlu0 %1258
        %v1260 = vrcp.pop %v1256
        %v1261 = vrcp.pop %v1259
        %v1262 = vmul.f32 %v1251, %v1260
        %v1263 = vmul.f32 %v1253, %v1261
        %v1264 = vpack.c.bf16 %v1262, %v1262
        %v1265 = vpack.c.bf16 %v1263, %v1263
        %v1267 = vsel %vm1241, %v1264, 0
        %vm1269 = vcmask 1043456
        %v1271 = vsel %vm1269, %v1200, 0
        %1273 = vmatpush.bf16.msra.mxu0 0
        %1274 = vmatpush.bf16.msra.mxu0 0
        %1275 = vmatpush.bf16.msra.mxu0 0
        %1276 = vmatpush.bf16.msra.mxu0 0
        %1277 = vmatpush.bf16.msra.mxu0 0
        %1278 = vmatpush.bf16.msra.mxu0 0
        %1279 = vmatpush.bf16.msra.mxu0 0
        %1280 = vmatpush.bf16.msra.mxu0 %v1271
        %1281 = vmatmul.bf16.gmra.mxu0 %v1267
        %v1282 = vpop.f32.mrf.mxu0
        %v1283 = vadd.f32 0.0, %v1282
        %v1284 = vpop.f32.mrf.mxu0
        %1285 = vdwg.mxu0
        %v1287 = vsel %vm1241, %v1265, 0
        %v1290 = vsel %vm1269, %v1201, 0
        %1292 = vmatpush.bf16.msra.mxu0 0
        %1293 = vmatpush.bf16.msra.mxu0 0
        %1294 = vmatpush.bf16.msra.mxu0 0
        %1295 = vmatpush.bf16.msra.mxu0 0
        %1296 = vmatpush.bf16.msra.mxu0 0
        %1297 = vmatpush.bf16.msra.mxu0 0
        %1298 = vmatpush.bf16.msra.mxu0 0
        %1299 = vmatpush.bf16.msra.mxu0 %v1290
        %1300 = vmatmul.bf16.gmra.mxu0 %v1287
        %v1301 = vpop.f32.mrf.mxu0
        %v1302 = vadd.f32 0.0, %v1301
        %v1303 = vpop.f32.mrf.mxu0
        %1304 = vdwg.mxu0
        %v1306 = vunpack.c.l.b16 %v1196
        %v1307 = vpack.c.b16 %v1306, %v1306
        %1308 = vrot.lane.b32.xlu0 %v1307, 112
        %v1309 = vpop.permute.xlu0 %1308
        %v1311 = vunpack.c.l.b16 %v1198
        %v1312 = vpack.c.b16 %v1311, %v1311
        %1313 = vrot.lane.b32.xlu0 %v1312, 112
        %v1314 = vpop.permute.xlu0 %1313
        %v1316 = vsel %vm1202, %v1309, 0
        %v1319 = vsel %vm1202, %v1314, 0
        %1321 = vmatpush.bf16.xpose.msra.mxu0 0
        %1322 = vmatpush.bf16.xpose.msra.mxu0 0
        %1323 = vmatpush.bf16.xpose.msra.mxu0 0
        %1324 = vmatpush.bf16.xpose.msra.mxu0 0
        %1325 = vmatpush.bf16.xpose.msra.mxu0 0
        %1326 = vmatpush.bf16.xpose.msra.mxu0 0
        %1327 = vmatpush.bf16.xpose.msra.mxu0 0
        %1328 = vmatpush.bf16.xpose.msra.mxu0 %v1319
        %1329 = vmatmul.bf16.gmra.mxu0 %v1316
        %v1330 = vpop.f32.mrf.mxu0
        %v1331 = vadd.f32 0.0, %v1330
        %v1332 = vpop.f32.mrf.mxu0
        %1333 = vdwg.mxu0
        %v1335 = vunpack.c.l.b16 %v1197
        %v1336 = vpack.c.b16 %v1335, %v1335
        %1337 = vrot.lane.b32.xlu0 %v1336, 112
        %v1338 = vpop.permute.xlu0 %1337
        %v1340 = vunpack.c.l.b16 %v1199
        %v1341 = vpack.c.b16 %v1340, %v1340
        %1342 = vrot.lane.b32.xlu0 %v1341, 112
        %v1343 = vpop.permute.xlu0 %1342
        %v1345 = vsel %vm1202, %v1338, 0
        %v1348 = vsel %vm1202, %v1343, 0
        %1350 = vmatpush.bf16.xpose.msra.mxu0 0
        %1351 = vmatpush.bf16.xpose.msra.mxu0 0
        %1352 = vmatpush.bf16.xpose.msra.mxu0 0
        %1353 = vmatpush.bf16.xpose.msra.mxu0 0
        %1354 = vmatpush.bf16.xpose.msra.mxu0 0
        %1355 = vmatpush.bf16.xpose.msra.mxu0 0
        %1356 = vmatpush.bf16.xpose.msra.mxu0 0
        %1357 = vmatpush.bf16.xpose.msra.mxu0 %v1348
        %1358 = vmatmul.bf16.gmra.mxu0 %v1345
        %v1359 = vpop.f32.mrf.mxu0
        %v1360 = vadd.f32 0.0, %v1359
        %v1361 = vpop.f32.mrf.mxu0
        %1362 = vdwg.mxu0
        %v1363 = vsel %vm1241, %v1331, -inf
        %1364 = vmax.xlane.f32.xlu0 %v1363
        %v1365 = vpop.xlane.xlu0 %1364
        %v1366 = vsel %vm1241, %v1360, -inf
        %1367 = vmax.xlane.f32.xlu0 %v1366
        %v1368 = vpop.xlane.xlu0 %1367
        %v1369 = vsub.f32 %v1331, %v1365
        %v1370 = vsub.f32 %v1360, %v1368
        %v1371 = vmul.f32 %v1369, 1.442695
        %v1372 = vpow.pop %v1371
        %v1373 = vmul.f32 %v1370, 1.442695
        %v1374 = vpow.pop %v1373
        %v1375 = vsel %vm1241, %v1372, 0.0
        %1376 = vadd.xlane.f32.xlu0 %v1375
        %v1377 = vpop.xlane.xlu0 %1376
        %v1378 = vsel %vm1241, %v1374, 0.0
        %1379 = vadd.xlane.f32.xlu0 %v1378
        %v1380 = vpop.xlane.xlu0 %1379
        %v1381 = vrcp.pop %v1377
        %v1382 = vrcp.pop %v1380
        %v1383 = vmul.f32 %v1372, %v1381
        %v1384 = vmul.f32 %v1374, %v1382
        %v1385 = vpack.c.bf16 %v1383, %v1383
        %v1386 = vpack.c.bf16 %v1384, %v1384
        %v1388 = vunpack.c.l.b16 %v1200
        %v1389 = vpack.c.b16 %v1388, %v1388
        %1390 = vrot.lane.b32.xlu0 %v1389, 112
        %v1391 = vpop.permute.xlu0 %1390
        %v1393 = vsel %vm1241, %v1385, 0
        %v1396 = vsel %vm1269, %v1391, 0
        %1398 = vmatpush.bf16.msra.mxu0 0
        %1399 = vmatpush.bf16.msra.mxu0 0
        %1400 = vmatpush.bf16.msra.mxu0 0
        %1401 = vmatpush.bf16.msra.mxu0 0
        %1402 = vmatpush.bf16.msra.mxu0 0
        %1403 = vmatpush.bf16.msra.mxu0 0
        %1404 = vmatpush.bf16.msra.mxu0 0
        %1405 = vmatpush.bf16.msra.mxu0 %v1396
        %1406 = vmatmul.bf16.gmra.mxu0 %v1393
        %v1407 = vpop.f32.mrf.mxu0
        %v1408 = vadd.f32 0.0, %v1407
        %v1409 = vpop.f32.mrf.mxu0
        %1410 = vdwg.mxu0
        %v1412 = vunpack.c.l.b16 %v1201
        %v1413 = vpack.c.b16 %v1412, %v1412
        %1414 = vrot.lane.b32.xlu0 %v1413, 112
        %v1415 = vpop.permute.xlu0 %1414
        %v1417 = vsel %vm1241, %v1386, 0
        %v1420 = vsel %vm1269, %v1415, 0
        %1422 = vmatpush.bf16.msra.mxu0 0
        %1423 = vmatpush.bf16.msra.mxu0 0
        %1424 = vmatpush.bf16.msra.mxu0 0
        %1425 = vmatpush.bf16.msra.mxu0 0
        %1426 = vmatpush.bf16.msra.mxu0 0
        %1427 = vmatpush.bf16.msra.mxu0 0
        %1428 = vmatpush.bf16.msra.mxu0 0
        %1429 = vmatpush.bf16.msra.mxu0 %v1420
        %1430 = vmatmul.bf16.gmra.mxu0 %v1417
        %v1431 = vpop.f32.mrf.mxu0
        %v1432 = vadd.f32 0.0, %v1431
        %v1433 = vpop.f32.mrf.mxu0
        %1434 = vdwg.mxu0
        %1435 = vrot.lane.b32.xlu0 %v1307, 96
        %v1436 = vpop.permute.xlu0 %1435
        %1437 = vrot.lane.b32.xlu0 %v1312, 96
        %v1438 = vpop.permute.xlu0 %1437
        %v1440 = vsel %vm1202, %v1436, 0
        %v1443 = vsel %vm1202, %v1438, 0
        %1445 = vmatpush.bf16.xpose.msra.mxu0 0
        %1446 = vmatpush.bf16.xpose.msra.mxu0 0
        %1447 = vmatpush.bf16.xpose.msra.mxu0 0
        %1448 = vmatpush.bf16.xpose.msra.mxu0 0
        %1449 = vmatpush.bf16.xpose.msra.mxu0 0
        %1450 = vmatpush.bf16.xpose.msra.mxu0 0
        %1451 = vmatpush.bf16.xpose.msra.mxu0 0
        %1452 = vmatpush.bf16.xpose.msra.mxu0 %v1443
        %1453 = vmatmul.bf16.gmra.mxu0 %v1440
        %v1454 = vpop.f32.mrf.mxu0
        %v1455 = vadd.f32 0.0, %v1454
        %v1456 = vpop.f32.mrf.mxu0
        %1457 = vdwg.mxu0
        %1458 = vrot.lane.b32.xlu0 %v1336, 96
        %v1459 = vpop.permute.xlu0 %1458
        %1460 = vrot.lane.b32.xlu0 %v1341, 96
        %v1461 = vpop.permute.xlu0 %1460
        %v1463 = vsel %vm1202, %v1459, 0
        %v1466 = vsel %vm1202, %v1461, 0
        %1468 = vmatpush.bf16.xpose.msra.mxu0 0
        %1469 = vmatpush.bf16.xpose.msra.mxu0 0
        %1470 = vmatpush.bf16.xpose.msra.mxu0 0
        %1471 = vmatpush.bf16.xpose.msra.mxu0 0
        %1472 = vmatpush.bf16.xpose.msra.mxu0 0
        %1473 = vmatpush.bf16.xpose.msra.mxu0 0
        %1474 = vmatpush.bf16.xpose.msra.mxu0 0
        %1475 = vmatpush.bf16.xpose.msra.mxu0 %v1466
        %1476 = vmatmul.bf16.gmra.mxu0 %v1463
        %v1477 = vpop.f32.mrf.mxu0
        %v1478 = vadd.f32 0.0, %v1477
        %v1479 = vpop.f32.mrf.mxu0
        %1480 = vdwg.mxu0
        %v1481 = vsel %vm1241, %v1455, -inf
        %1482 = vmax.xlane.f32.xlu0 %v1481
        %v1483 = vpop.xlane.xlu0 %1482
        %v1484 = vsel %vm1241, %v1478, -inf
        %1485 = vmax.xlane.f32.xlu0 %v1484
        %v1486 = vpop.xlane.xlu0 %1485
        %v1487 = vsub.f32 %v1455, %v1483
        %v1488 = vsub.f32 %v1478, %v1486
        %v1489 = vmul.f32 %v1487, 1.442695
        %v1490 = vpow.pop %v1489
        %v1491 = vmul.f32 %v1488, 1.442695
        %v1492 = vpow.pop %v1491
        %v1493 = vsel %vm1241, %v1490, 0.0
        %1494 = vadd.xlane.f32.xlu0 %v1493
        %v1495 = vpop.xlane.xlu0 %1494
        %v1496 = vsel %vm1241, %v1492, 0.0
        %1497 = vadd.xlane.f32.xlu0 %v1496
        %v1498 = vpop.xlane.xlu0 %1497
        %v1499 = vrcp.pop %v1495
        %v1500 = vrcp.pop %v1498
        %v1501 = vmul.f32 %v1490, %v1499
        %v1502 = vmul.f32 %v1492, %v1500
        %v1503 = vpack.c.bf16 %v1501, %v1501
        %v1504 = vpack.c.bf16 %v1502, %v1502
        %1505 = vrot.lane.b32.xlu0 %v1389, 96
        %v1506 = vpop.permute.xlu0 %1505
        %v1508 = vsel %vm1241, %v1503, 0
        %v1511 = vsel %vm1269, %v1506, 0
        %1513 = vmatpush.bf16.msra.mxu0 0
        %1514 = vmatpush.bf16.msra.mxu0 0
        %1515 = vmatpush.bf16.msra.mxu0 0
        %1516 = vmatpush.bf16.msra.mxu0 0
        %1517 = vmatpush.bf16.msra.mxu0 0
        %1518 = vmatpush.bf16.msra.mxu0 0
        %1519 = vmatpush.bf16.msra.mxu0 0
        %1520 = vmatpush.bf16.msra.mxu0 %v1511
        %1521 = vmatmul.bf16.gmra.mxu0 %v1508
        %v1522 = vpop.f32.mrf.mxu0
        %v1523 = vadd.f32 0.0, %v1522
        %v1524 = vpop.f32.mrf.mxu0
        %1525 = vdwg.mxu0
        %1526 = vrot.lane.b32.xlu0 %v1413, 96
        %v1527 = vpop.permute.xlu0 %1526
        %v1529 = vsel %vm1241, %v1504, 0
        %v1532 = vsel %vm1269, %v1527, 0
        %1534 = vmatpush.bf16.msra.mxu0 0
        %1535 = vmatpush.bf16.msra.mxu0 0
        %1536 = vmatpush.bf16.msra.mxu0 0
        %1537 = vmatpush.bf16.msra.mxu0 0
        %1538 = vmatpush.bf16.msra.mxu0 0
        %1539 = vmatpush.bf16.msra.mxu0 0
        %1540 = vmatpush.bf16.msra.mxu0 0
        %1541 = vmatpush.bf16.msra.mxu0 %v1532
        %1542 = vmatmul.bf16.gmra.mxu0 %v1529
        %v1543 = vpop.f32.mrf.mxu0
        %v1544 = vadd.f32 0.0, %v1543
        %v1545 = vpop.f32.mrf.mxu0
        %1546 = vdwg.mxu0
        %1547 = vrot.lane.b32.xlu0 %v1307, 80
        %v1548 = vpop.permute.xlu0 %1547
        %1549 = vrot.lane.b32.xlu0 %v1312, 80
        %v1550 = vpop.permute.xlu0 %1549
        %v1552 = vsel %vm1202, %v1548, 0
        %v1555 = vsel %vm1202, %v1550, 0
        %1557 = vmatpush.bf16.xpose.msra.mxu0 0
        %1558 = vmatpush.bf16.xpose.msra.mxu0 0
        %1559 = vmatpush.bf16.xpose.msra.mxu0 0
        %1560 = vmatpush.bf16.xpose.msra.mxu0 0
        %1561 = vmatpush.bf16.xpose.msra.mxu0 0
        %1562 = vmatpush.bf16.xpose.msra.mxu0 0
        %1563 = vmatpush.bf16.xpose.msra.mxu0 0
        %1564 = vmatpush.bf16.xpose.msra.mxu0 %v1555
        %1565 = vmatmul.bf16.gmra.mxu0 %v1552
        %v1566 = vpop.f32.mrf.mxu0
        %v1567 = vadd.f32 0.0, %v1566
        %v1568 = vpop.f32.mrf.mxu0
        %1569 = vdwg.mxu0
        %1570 = vrot.lane.b32.xlu0 %v1336, 80
        %v1571 = vpop.permute.xlu0 %1570
        %1572 = vrot.lane.b32.xlu0 %v1341, 80
        %v1573 = vpop.permute.xlu0 %1572
        %v1575 = vsel %vm1202, %v1571, 0
        %v1578 = vsel %vm1202, %v1573, 0
        %1580 = vmatpush.bf16.xpose.msra.mxu0 0
        %1581 = vmatpush.bf16.xpose.msra.mxu0 0
        %1582 = vmatpush.bf16.xpose.msra.mxu0 0
        %1583 = vmatpush.bf16.xpose.msra.mxu0 0
        %1584 = vmatpush.bf16.xpose.msra.mxu0 0
        %1585 = vmatpush.bf16.xpose.msra.mxu0 0
        %1586 = vmatpush.bf16.xpose.msra.mxu0 0
        %1587 = vmatpush.bf16.xpose.msra.mxu0 %v1578
        %1588 = vmatmul.bf16.gmra.mxu0 %v1575
        %v1589 = vpop.f32.mrf.mxu0
        %v1590 = vadd.f32 0.0, %v1589
        %v1591 = vpop.f32.mrf.mxu0
        %1592 = vdwg.mxu0
        %v1593 = vsel %vm1241, %v1567, -inf
        %1594 = vmax.xlane.f32.xlu0 %v1593
        %v1595 = vpop.xlane.xlu0 %1594
        %v1596 = vsel %vm1241, %v1590, -inf
        %1597 = vmax.xlane.f32.xlu0 %v1596
        %v1598 = vpop.xlane.xlu0 %1597
        %v1599 = vsub.f32 %v1567, %v1595
        %v1600 = vsub.f32 %v1590, %v1598
        %v1601 = vmul.f32 %v1599, 1.442695
        %v1602 = vpow.pop %v1601
        %v1603 = vmul.f32 %v1600, 1.442695
        %v1604 = vpow.pop %v1603
        %v1605 = vsel %vm1241, %v1602, 0.0
        %1606 = vadd.xlane.f32.xlu0 %v1605
        %v1607 = vpop.xlane.xlu0 %1606
        %v1608 = vsel %vm1241, %v1604, 0.0
        %1609 = vadd.xlane.f32.xlu0 %v1608
        %v1610 = vpop.xlane.xlu0 %1609
        %v1611 = vrcp.pop %v1607
        %v1612 = vrcp.pop %v1610
        %v1613 = vmul.f32 %v1602, %v1611
        %v1614 = vmul.f32 %v1604, %v1612
        %v1615 = vpack.c.bf16 %v1613, %v1613
        %v1616 = vpack.c.bf16 %v1614, %v1614
        %1617 = vrot.lane.b32.xlu0 %v1389, 80
        %v1618 = vpop.permute.xlu0 %1617
        %v1620 = vsel %vm1241, %v1615, 0
        %v1623 = vsel %vm1269, %v1618, 0
        %1625 = vmatpush.bf16.msra.mxu0 0
        %1626 = vmatpush.bf16.msra.mxu0 0
        %1627 = vmatpush.bf16.msra.mxu0 0
        %1628 = vmatpush.bf16.msra.mxu0 0
        %1629 = vmatpush.bf16.msra.mxu0 0
        %1630 = vmatpush.bf16.msra.mxu0 0
        %1631 = vmatpush.bf16.msra.mxu0 0
        %1632 = vmatpush.bf16.msra.mxu0 %v1623
        %1633 = vmatmul.bf16.gmra.mxu0 %v1620
        %v1634 = vpop.f32.mrf.mxu0
        %v1635 = vadd.f32 0.0, %v1634
        %v1636 = vpop.f32.mrf.mxu0
        %1637 = vdwg.mxu0
        %1638 = vrot.lane.b32.xlu0 %v1413, 80
        %v1639 = vpop.permute.xlu0 %1638
        %v1641 = vsel %vm1241, %v1616, 0
        %v1644 = vsel %vm1269, %v1639, 0
        %1646 = vmatpush.bf16.msra.mxu0 0
        %1647 = vmatpush.bf16.msra.mxu0 0
        %1648 = vmatpush.bf16.msra.mxu0 0
        %1649 = vmatpush.bf16.msra.mxu0 0
        %1650 = vmatpush.bf16.msra.mxu0 0
        %1651 = vmatpush.bf16.msra.mxu0 0
        %1652 = vmatpush.bf16.msra.mxu0 0
        %1653 = vmatpush.bf16.msra.mxu0 %v1644
        %1654 = vmatmul.bf16.gmra.mxu0 %v1641
        %v1655 = vpop.f32.mrf.mxu0
        %v1656 = vadd.f32 0.0, %v1655
        %v1657 = vpop.f32.mrf.mxu0
        %1658 = vdwg.mxu0
        %1661 = vrot.lane.b32.xlu0 %v1408, 16
        %v1662 = vpop.permute.xlu0 %1661
        %1663 = vrot.lane.b32.xlu0 %v1432, 16
        %v1664 = vpop.permute.xlu0 %1663
        %1669 = vrot.lane.b32.xlu0 %v1523, 32
        %v1670 = vpop.permute.xlu0 %1669
        %1671 = vrot.lane.b32.xlu0 %v1544, 32
        %v1672 = vpop.permute.xlu0 %1671
        %1677 = vrot.lane.b32.xlu0 %v1635, 48
        %v1678 = vpop.permute.xlu0 %1677
        %1679 = vrot.lane.b32.xlu0 %v1656, 48
        %v1680 = vpop.permute.xlu0 %1679
        %v1683 = vsel %vm1202, %v1283, %v1662
        %v1684 = vsel %vm1202, %v1302, %v1664
        %vm1685 = vcmask 261120
        %v1686 = vsel %vm1685, %v1683, %v1670
        %v1687 = vsel %vm1685, %v1684, %v1672
        %vm1688 = vcmask 392192
        %v1689 = vsel %vm1688, %v1686, %v1678
        %v1690 = vsel %vm1688, %v1687, %v1680
        %v1691 = vpack.c.bf16 %v1690, %v1689
        %v1692 = vld [vmem:[%s942] sm:$0xf]
        %v1693 = vld [vmem:[%s942 + $0x4] sm:$0xf]
        %v1694 = vld [vmem:[%s942 + $0x8] sm:$0xf]
        %v1695 = vld [vmem:[%s942 + $0xc] sm:$0xf]
        %v1696 = vld [vmem:[%s942 + $0x10] sm:$0xf]
        %v1697 = vld [vmem:[%s942 + $0x14] sm:$0xf]
        %v1698 = vld [vmem:[%s942 + $0x18] sm:$0xf]
        %v1699 = vld [vmem:[%s942 + $0x1c] sm:$0xf]
        %v1700 = vld [vmem:[%s945] sm:$0x1]
        %v1702 = vperm.slane %v1700, 0
        %v1712 = vunpack.c.l.b16 %v1692
        %v1713 = vunpack.c.l.b16 %v1693
        %v1714 = vunpack.c.l.b16 %v1694
        %v1715 = vunpack.c.l.b16 %v1695
        %v1716 = vunpack.c.l.b16 %v1696
        %v1717 = vunpack.c.l.b16 %v1697
        %v1718 = vunpack.c.l.b16 %v1698
        %v1719 = vunpack.c.l.b16 %v1699
        %v1720 = vpack.c.b16 %v1713, %v1712
        %v1721 = vpack.c.b16 %v1715, %v1714
        %v1722 = vpack.c.b16 %v1717, %v1716
        %v1723 = vpack.c.b16 %v1719, %v1718
        %v1729 = vsel %vm980, %v1691, 0
        %1731 = vmatpush.bf16.msra.mxu0 0
        %1732 = vmatpush.bf16.msra.mxu0 0
        %1733 = vmatpush.bf16.msra.mxu0 0
        %1734 = vmatpush.bf16.msra.mxu0 0
        %1735 = vmatpush.bf16.msra.mxu0 %v1723
        %1736 = vmatpush.bf16.msra.mxu0 %v1722
        %1737 = vmatpush.bf16.msra.mxu0 %v1721
        %1738 = vmatpush.bf16.msra.mxu0 %v1720
        %1739 = vmatmul.bf16.gmra.mxu0 %v1729
        %v1740 = vpop.f32.mrf.mxu0
        %v1741 = vadd.f32 %v1702, %v1740
        %v1742 = vpop.f32.mrf.mxu0
        %v1743 = vadd.f32 %v1702, %v1742
        %1744 = vdwg.mxu0
        %v1745 = vadd.f32 %v976, %v1741
        %v1746 = vadd.f32 %v977, %v1743
        %v1747 = vld [vmem:[%s948] sm:$0x1]
        %v1748 = vld [vmem:[%s810] sm:$0x1]
        %v1749 = vsel %vm980, %v1745, 0.0
        %1750 = vadd.xlane.f32.xlu0 %v1749
        %v1751 = vpop.xlane.xlu0 %1750
        %v1752 = vsel %vm980, %v1746, 0.0
        %1753 = vadd.xlane.f32.xlu0 %v1752
        %v1754 = vpop.xlane.xlu0 %1753
        %v1755 = vmul.f32 %v1751, %v993
        %v1756 = vmul.f32 %v1754, %v993
        %v1757 = vsub.f32 %v1745, %v1755
        %v1758 = vsub.f32 %v1746, %v1756
        %v1759 = vmul.f32 %v1757, %v1757
        %v1760 = vmul.f32 %v1758, %v1758
        %v1761 = vsel %vm980, %v1759, 0.0
        %1762 = vadd.xlane.f32.xlu0 %v1761
        %v1763 = vpop.xlane.xlu0 %1762
        %v1764 = vsel %vm980, %v1760, 0.0
        %1765 = vadd.xlane.f32.xlu0 %v1764
        %v1766 = vpop.xlane.xlu0 %1765
        %v1767 = vmul.f32 %v1763, %v993
        %v1768 = vmul.f32 %v1766, %v993
        %v1769 = vadd.f32 %v1767, 1e-05
        %v1770 = vadd.f32 %v1768, 1e-05
        %v1771 = vrsqrt.pop %v1769
        %v1772 = vmul.f32 %v1771, %v1769
        %v1773 = vmul.f32 %v1772, %v1771
        %v1774 = vmul.f32 0.5, %v1773
        %v1775 = vsub.f32 1.5, %v1774
        %v1776 = vmul.f32 %v1771, %v1775
        %vm1777 = vweird.f32 %v1769
        %vm1778 = vweird.f32 %v1771
        %vm1779 = vmor %vm1777, %vm1778
        %v1780 = vsel %vm1779, %v1771, %v1776
        %v1781 = vrsqrt.pop %v1770
        %v1782 = vmul.f32 %v1781, %v1770
        %v1783 = vmul.f32 %v1782, %v1781
        %v1784 = vmul.f32 0.5, %v1783
        %v1785 = vsub.f32 1.5, %v1784
        %v1786 = vmul.f32 %v1781, %v1785
        %vm1787 = vweird.f32 %v1770
        %vm1788 = vweird.f32 %v1781
        %vm1789 = vmor %vm1787, %vm1788
        %v1790 = vsel %vm1789, %v1781, %v1786
        %v1791 = vmul.f32 %v1757, %v1780
        %v1792 = vmul.f32 %v1758, %v1790
        %v1794 = vperm.slane %v1747, 0
        %v1796 = vmul.f32 %v1791, %v1794
        %v1797 = vmul.f32 %v1792, %v1794
        %v1799 = vperm.slane %v1748, 0
        %v1801 = vadd.f32 %v1796, %v1799
        %v1802 = vadd.f32 %v1797, %v1799
        %v1803 = vpack.c.bf16 %v1802, %v1801
        %v1804 = vld [vmem:[%s953] sm:$0xff]
        %v1805 = vld [vmem:[%s953 + $0x8] sm:$0xff]
        %v1806 = vld [vmem:[%s953 + $0x10] sm:$0xff]
        %v1807 = vld [vmem:[%s953 + $0x18] sm:$0xff]
        %v1808 = vld [vmem:[%s953 + $0x20] sm:$0xff]
        %v1809 = vld [vmem:[%s953 + $0x28] sm:$0xff]
        %v1810 = vld [vmem:[%s953 + $0x30] sm:$0xff]
        %v1811 = vld [vmem:[%s953 + $0x38] sm:$0xff]
        %v1812 = vld [vmem:[%s957] sm:$0x3]
        %v1814 = vperm.slane %v1812, 0
        %v1815 = vperm.slane %v1812, 1
        %v1826 = vunpack.c.l.b16 %v1804
        %v1827 = vunpack.c.h.b16 %v1804
        %v1828 = vunpack.c.l.b16 %v1805
        %v1829 = vunpack.c.h.b16 %v1805
        %v1830 = vunpack.c.l.b16 %v1806
        %v1831 = vunpack.c.h.b16 %v1806
        %v1832 = vunpack.c.l.b16 %v1807
        %v1833 = vunpack.c.h.b16 %v1807
        %v1834 = vunpack.c.l.b16 %v1808
        %v1835 = vunpack.c.h.b16 %v1808
        %v1836 = vunpack.c.l.b16 %v1809
        %v1837 = vunpack.c.h.b16 %v1809
        %v1838 = vunpack.c.l.b16 %v1810
        %v1839 = vunpack.c.h.b16 %v1810
        %v1840 = vunpack.c.l.b16 %v1811
        %v1841 = vunpack.c.h.b16 %v1811
        %v1842 = vpack.c.b16 %v1828, %v1826
        %v1843 = vpack.c.b16 %v1829, %v1827
        %v1844 = vpack.c.b16 %v1832, %v1830
        %v1845 = vpack.c.b16 %v1833, %v1831
        %v1846 = vpack.c.b16 %v1836, %v1834
        %v1847 = vpack.c.b16 %v1837, %v1835
        %v1848 = vpack.c.b16 %v1840, %v1838
        %v1849 = vpack.c.b16 %v1841, %v1839
        %v1859 = vsel %vm980, %v1803, 0
        %1861 = vmatpush.bf16.msra.mxu0 0
        %1862 = vmatpush.bf16.msra.mxu0 0
        %1863 = vmatpush.bf16.msra.mxu0 0
        %1864 = vmatpush.bf16.msra.mxu0 0
        %1865 = vmatpush.bf16.msra.mxu0 %v1848
        %1866 = vmatpush.bf16.msra.mxu0 %v1846
        %1867 = vmatpush.bf16.msra.mxu0 %v1844
        %1868 = vmatpush.bf16.msra.mxu0 %v1842
        %1869 = vmatmul.bf16.gmra.mxu0 %v1859
        %v1870 = vpop.f32.mrf.mxu0
        %v1871 = vadd.f32 %v1814, %v1870
        %v1872 = vpop.f32.mrf.mxu0
        %v1873 = vadd.f32 %v1814, %v1872
        %1874 = vdwg.mxu0
        %1875 = vmatpush.bf16.msra.mxu0 0
        %1876 = vmatpush.bf16.msra.mxu0 0
        %1877 = vmatpush.bf16.msra.mxu0 0
        %1878 = vmatpush.bf16.msra.mxu0 0
        %1879 = vmatpush.bf16.msra.mxu0 %v1849
        %1880 = vmatpush.bf16.msra.mxu0 %v1847
        %1881 = vmatpush.bf16.msra.mxu0 %v1845
        %1882 = vmatpush.bf16.msra.mxu0 %v1843
        %1883 = vmatmul.bf16.gmra.mxu0 %v1859
        %v1884 = vpop.f32.mrf.mxu0
        %v1885 = vadd.f32 %v1815, %v1884
        %v1886 = vpop.f32.mrf.mxu0
        %v1887 = vadd.f32 %v1815, %v1886
        %1888 = vdwg.mxu0
        %v1889 = vmax.f32 %v1871, 0.0
        %v1890 = vmax.f32 %v1885, 0.0
        %v1891 = vmax.f32 %v1873, 0.0
        %v1892 = vmax.f32 %v1887, 0.0
        %v1893 = vpack.c.bf16 %v1891, %v1889
        %v1894 = vpack.c.bf16 %v1892, %v1890
        %v1895 = vld [vmem:[%s962] sm:$0xf]
        %v1896 = vld [vmem:[%s962 + $0x4] sm:$0xf]
        %v1897 = vld [vmem:[%s962 + $0x8] sm:$0xf]
        %v1898 = vld [vmem:[%s962 + $0xc] sm:$0xf]
        %v1899 = vld [vmem:[%s962 + $0x10] sm:$0xf]
        %v1900 = vld [vmem:[%s962 + $0x14] sm:$0xf]
        %v1901 = vld [vmem:[%s962 + $0x18] sm:$0xf]
        %v1902 = vld [vmem:[%s962 + $0x1c] sm:$0xf]
        %v1903 = vld [vmem:[%s962 + $0x20] sm:$0xf]
        %v1904 = vld [vmem:[%s962 + $0x24] sm:$0xf]
        %v1905 = vld [vmem:[%s962 + $0x28] sm:$0xf]
        %v1906 = vld [vmem:[%s962 + $0x2c] sm:$0xf]
        %v1907 = vld [vmem:[%s962 + $0x30] sm:$0xf]
        %v1908 = vld [vmem:[%s962 + $0x34] sm:$0xf]
        %v1909 = vld [vmem:[%s962 + $0x38] sm:$0xf]
        %v1910 = vld [vmem:[%s962 + $0x3c] sm:$0xf]
        %v1911 = vld [vmem:[%s962 + $0x40] sm:$0xf]
        %v1912 = vld [vmem:[%s962 + $0x44] sm:$0xf]
        %v1913 = vld [vmem:[%s962 + $0x48] sm:$0xf]
        %v1914 = vld [vmem:[%s962 + $0x4c] sm:$0xf]
        %v1915 = vld [vmem:[%s962 + $0x50] sm:$0xf]
        %v1916 = vld [vmem:[%s962 + $0x54] sm:$0xf]
        %v1917 = vld [vmem:[%s962 + $0x58] sm:$0xf]
        %v1918 = vld [vmem:[%s962 + $0x5c] sm:$0xf]
        %v1919 = vld [vmem:[%s962 + $0x60] sm:$0xf]
        %v1920 = vld [vmem:[%s962 + $0x64] sm:$0xf]
        %v1921 = vld [vmem:[%s962 + $0x68] sm:$0xf]
        %v1922 = vld [vmem:[%s962 + $0x6c] sm:$0xf]
        %v1923 = vld [vmem:[%s962 + $0x70] sm:$0xf]
        %v1924 = vld [vmem:[%s962 + $0x74] sm:$0xf]
        %v1925 = vld [vmem:[%s962 + $0x78] sm:$0xf]
        %v1926 = vld [vmem:[%s962 + $0x7c] sm:$0xf]
        %v1927 = vld [vmem:[%s965] sm:$0x1]
        %v1929 = vperm.slane %v1927, 0
        %v1963 = vunpack.c.l.b16 %v1895
        %v1964 = vunpack.c.l.b16 %v1896
        %v1965 = vunpack.c.l.b16 %v1897
        %v1966 = vunpack.c.l.b16 %v1898
        %v1967 = vunpack.c.l.b16 %v1899
        %v1968 = vunpack.c.l.b16 %v1900
        %v1969 = vunpack.c.l.b16 %v1901
        %v1970 = vunpack.c.l.b16 %v1902
        %v1971 = vunpack.c.l.b16 %v1903
        %v1972 = vunpack.c.l.b16 %v1904
        %v1973 = vunpack.c.l.b16 %v1905
        %v1974 = vunpack.c.l.b16 %v1906
        %v1975 = vunpack.c.l.b16 %v1907
        %v1976 = vunpack.c.l.b16 %v1908
        %v1977 = vunpack.c.l.b16 %v1909
        %v1978 = vunpack.c.l.b16 %v1910
        %v1979 = vunpack.c.l.b16 %v1911
        %v1980 = vunpack.c.l.b16 %v1912
        %v1981 = vunpack.c.l.b16 %v1913
        %v1982 = vunpack.c.l.b16 %v1914
        %v1983 = vunpack.c.l.b16 %v1915
        %v1984 = vunpack.c.l.b16 %v1916
        %v1985 = vunpack.c.l.b16 %v1917
        %v1986 = vunpack.c.l.b16 %v1918
        %v1987 = vunpack.c.l.b16 %v1919
        %v1988 = vunpack.c.l.b16 %v1920
        %v1989 = vunpack.c.l.b16 %v1921
        %v1990 = vunpack.c.l.b16 %v1922
        %v1991 = vunpack.c.l.b16 %v1923
        %v1992 = vunpack.c.l.b16 %v1924
        %v1993 = vunpack.c.l.b16 %v1925
        %v1994 = vunpack.c.l.b16 %v1926
        %v1995 = vpack.c.b16 %v1964, %v1963
        %v1996 = vpack.c.b16 %v1966, %v1965
        %v1997 = vpack.c.b16 %v1968, %v1967
        %v1998 = vpack.c.b16 %v1970, %v1969
        %v1999 = vpack.c.b16 %v1972, %v1971
        %v2000 = vpack.c.b16 %v1974, %v1973
        %v2001 = vpack.c.b16 %v1976, %v1975
        %v2002 = vpack.c.b16 %v1978, %v1977
        %v2003 = vpack.c.b16 %v1980, %v1979
        %v2004 = vpack.c.b16 %v1982, %v1981
        %v2005 = vpack.c.b16 %v1984, %v1983
        %v2006 = vpack.c.b16 %v1986, %v1985
        %v2007 = vpack.c.b16 %v1988, %v1987
        %v2008 = vpack.c.b16 %v1990, %v1989
        %v2009 = vpack.c.b16 %v1992, %v1991
        %v2010 = vpack.c.b16 %v1994, %v1993
        %2027 = vmatpush.bf16.msra.mxu0 %v2002
        %2028 = vmatpush.bf16.msra.mxu0 %v2001
        %2029 = vmatpush.bf16.msra.mxu0 %v2000
        %2030 = vmatpush.bf16.msra.mxu0 %v1999
        %2031 = vmatpush.bf16.msra.mxu0 %v1998
        %2032 = vmatpush.bf16.msra.mxu0 %v1997
        %2033 = vmatpush.bf16.msra.mxu0 %v1996
        %2034 = vmatpush.bf16.msra.mxu0 %v1995
        %2035 = vmatmul.bf16.gmra.mxu0 %v1893
        %v2036 = vpop.f32.mrf.mxu0
        %v2037 = vadd.f32 %v1929, %v2036
        %v2038 = vpop.f32.mrf.mxu0
        %v2039 = vadd.f32 %v1929, %v2038
        %2040 = vdwg.mxu0
        %2041 = vmatpush.bf16.msra.mxu0 %v2010
        %2042 = vmatpush.bf16.msra.mxu0 %v2009
        %2043 = vmatpush.bf16.msra.mxu0 %v2008
        %2044 = vmatpush.bf16.msra.mxu0 %v2007
        %2045 = vmatpush.bf16.msra.mxu0 %v2006
        %2046 = vmatpush.bf16.msra.mxu0 %v2005
        %2047 = vmatpush.bf16.msra.mxu0 %v2004
        %2048 = vmatpush.bf16.msra.mxu0 %v2003
        %2049 = vmatmul.bf16.gmra.mxu0 %v1894
        %v2050 = vpop.f32.mrf.mxu0
        %v2051 = vadd.f32 %v2037, %v2050
        %v2052 = vpop.f32.mrf.mxu0
        %v2053 = vadd.f32 %v2039, %v2052
        %2054 = vdwg.mxu0
        %v2055 = vadd.f32 %v1745, %v2051
        %v2056 = vadd.f32 %v1746, %v2053
        %2057 = vst.msk [vmem:[#allocation2] sm:$0xff] %vm980, %v2055
        %2058 = vst.msk [vmem:[#allocation2 + $0x8] sm:$0xff] %vm980, %v2056
        %p2059 = scmp.eq.s32.totalorder %s41, 1
        // Predicated region
        $region129: #{tpu_custom_call.1} parent=95 // pred_check
          %p2060 = pneg %p2059
        $region130: #{tpu_custom_call.1} parent=95 // pred_check_branch
          %2062 = sbr.rel (%p2060) target = $region132
        $region131: #{tpu_custom_call.1} parent=95 // pred_region
          %v2063 = vld [vmem:[%s17] sm:$0x1]
          %v2064 = vld [vmem:[%s18] sm:$0x1]
          %v2065 = vsel %vm980, %v2055, 0.0
          %2066 = vadd.xlane.f32.xlu0 %v2065
          %v2067 = vpop.xlane.xlu0 %2066
          %v2068 = vsel %vm980, %v2056, 0.0
          %2069 = vadd.xlane.f32.xlu0 %v2068
          %v2070 = vpop.xlane.xlu0 %2069
          %v2071 = vmul.f32 %v2067, %v993
          %v2072 = vmul.f32 %v2070, %v993
          %v2073 = vsub.f32 %v2055, %v2071
          %v2074 = vsub.f32 %v2056, %v2072
          %v2075 = vmul.f32 %v2073, %v2073
          %v2076 = vmul.f32 %v2074, %v2074
          %v2077 = vsel %vm980, %v2075, 0.0
          %2078 = vadd.xlane.f32.xlu0 %v2077
          %v2079 = vpop.xlane.xlu0 %2078
          %v2080 = vsel %vm980, %v2076, 0.0
          %2081 = vadd.xlane.f32.xlu0 %v2080
          %v2082 = vpop.xlane.xlu0 %2081
          %v2083 = vmul.f32 %v2079, %v993
          %v2084 = vmul.f32 %v2082, %v993
          %v2085 = vadd.f32 %v2083, 1e-05
          %v2086 = vadd.f32 %v2084, 1e-05
          %v2087 = vrsqrt.pop %v2085
          %v2088 = vmul.f32 %v2087, %v2085
          %v2089 = vmul.f32 %v2088, %v2087
          %v2090 = vmul.f32 0.5, %v2089
          %v2091 = vsub.f32 1.5, %v2090
          %v2092 = vmul.f32 %v2087, %v2091
          %vm2093 = vweird.f32 %v2085
          %vm2094 = vweird.f32 %v2087
          %vm2095 = vmor %vm2093, %vm2094
          %v2096 = vsel %vm2095, %v2087, %v2092
          %v2097 = vrsqrt.pop %v2086
          %v2098 = vmul.f32 %v2097, %v2086
          %v2099 = vmul.f32 %v2098, %v2097
          %v2100 = vmul.f32 0.5, %v2099
          %v2101 = vsub.f32 1.5, %v2100
          %v2102 = vmul.f32 %v2097, %v2101
          %vm2103 = vweird.f32 %v2086
          %vm2104 = vweird.f32 %v2097
          %vm2105 = vmor %vm2103, %vm2104
          %v2106 = vsel %vm2105, %v2097, %v2102
          %v2107 = vmul.f32 %v2073, %v2096
          %v2108 = vmul.f32 %v2074, %v2106
          %v2110 = vperm.slane %v2063, 0
          %v2112 = vmul.f32 %v2107, %v2110
          %v2113 = vmul.f32 %v2108, %v2110
          %v2115 = vperm.slane %v2064, 0
          %v2117 = vadd.f32 %v2112, %v2115
          %v2118 = vadd.f32 %v2113, %v2115
          %2119 = vst.msk [vmem:[#allocation15] sm:$0xff] %vm980, %v2117
          %2120 = vst.msk [vmem:[#allocation15 + $0x8] sm:$0xff] %vm980, %v2118
        $region132: #{tpu_custom_call.1} parent=95 // pred_fallthru
          _
        // Predicated region
        $region133: #{tpu_custom_call.1} parent=95 // pred_check
          %p2121 = pneg %p533
        $region134: #{tpu_custom_call.1} parent=95 // pred_check_branch
          %2123 = sbr.rel (%p2121) target = $region136
        $region135: #{tpu_custom_call.1} parent=95 // pred_region
          %2125 = vsyncadd [#allocation5], 0
          %s2126 = sshll.u32 [#allocation15], 4
          %s2127 = int_to_ptr.vmem [resolvable:$true] %s2126
          %s2128 = sshll.u32 %s19, 4
          %s2129 = int_to_ptr.hbm [resolvable:$true] %s2128
          %2134 = dma.vmem_to_hbm [thread:$0]  %s2127, 256, %s2129, [#allocation5], 128, 128, 8
        $region136: #{tpu_custom_call.1} parent=95 // pred_fallthru
          _
        // Predicated region
        $region137: #{tpu_custom_call.1} parent=95 // pred_check
          %p2135 = pneg %p533
        $region138: #{tpu_custom_call.1} parent=95 // pred_check_branch
          %2137 = sbr.rel (%p2135) target = $region140
        $region139: #{tpu_custom_call.1} parent=95 // pred_region
          %2139 = dma.done [#allocation5], 256
        $region140: #{tpu_custom_call.1} parent=95 // pred_fallthru
          _
      $region96: #{tpu_custom_call.1} parent=5 // pred_fallthru
        _
      %p2140 = scmp.le.s32.totalorder 2, %s36
      // Predicated region
      $region141: #{tpu_custom_call.1} parent=5 // pred_check
        %p2141 = pneg %p2140
      $region142: #{tpu_custom_call.1} parent=5 // pred_check_branch
        %2143 = sbr.rel (%p2141) target = $region144
      $region143: #{tpu_custom_call.1} parent=5 // pred_region
        %s2144 = ssub.s32 %s36, 2
      $region144: #{tpu_custom_call.1} parent=5 // pred_fallthru
        _
    $region6: #{tpu_custom_call.1} parent=1 // loop_footer
      %s40 = sadd.s32 1, %s36
    $region7: #{tpu_custom_call.1} parent=1 // loop_footer_branch
      %35 = sbr.rel target = $region3
    $region8: #{tpu_custom_call.1} parent=1 // loop_exit
      _
    %2145 = vsyncpa [#allocation4], 1
    %s2146 = scalar_lea.sflag [#allocation4], 1
    %2147 = vsyncpa %s2146, 1
    %2148 = vsyncpa [#allocation7], 1
    %s2149 = scalar_lea.sflag [#allocation7], 1
    %2150 = vsyncpa %s2149, 1
    %2151 = vsyncpa [#allocation10], 1
    %s2152 = scalar_lea.sflag [#allocation10], 1
    %2153 = vsyncpa %s2152, 1
    %2154 = vsyncpa [#allocation13], 1
    %s2155 = scalar_lea.sflag [#allocation13], 1
    %2156 = vsyncpa %s2155, 1
    %2157 = vsyncpa [#allocation5], 1
    %s2158 = scalar_lea.sflag [#allocation5], 1
    %2159 = vsyncpa %s2158, 1

</llo_original>
